<compile_context>
chip_gen: v7x
topology: tpu7x:2x2x1
jax: 0.10.0
libtpu: 0.0.40
codegen_flags: <defaults>
</compile_context>

<pallas_src>
import functools

import numpy as np
import jax
import jax.numpy as jnp
from jax.experimental import pallas as pl
from jax.experimental.pallas import tpu as pltpu

W0 = 0.9  # class-0 weight (hard-coded in the PyTorch module)
W1 = 1.1  # class-1 weight


def _interp_matrix(out_size: int, in_size: int) -> jnp.ndarray:
    """1-D interpolation matrix matching F.interpolate(mode='bilinear', align_corners=False)."""
    i = np.arange(out_size, dtype=np.float64)
    scale = in_size / out_size
    src = (i + 0.5) * scale - 0.5
    src = np.maximum(src, 0.0)
    i0 = np.minimum(np.floor(src).astype(np.int64), in_size - 1)
    i1 = np.minimum(i0 + 1, in_size - 1)
    l1 = src - i0
    l0 = 1.0 - l1
    m = np.zeros((out_size, in_size), dtype=np.float32)
    m[np.arange(out_size), i0] += l0.astype(np.float32)
    m[np.arange(out_size), i1] += l1.astype(np.float32)
    return jnp.asarray(m)


def _choose_tiles(B, H, W, Hs, Ws):
    """(batch block, H row tile) sized for a few-MiB per-step VMEM working set."""
    # H row tile: a divisor of H that is a multiple of 128 (keeps the blocked last dim of
    # Th lane-aligned and the bf16 sublane dim aligned); fall back to the whole H.
    TH = H
    if H > 512:
        for cand in (512, 384, 256, 128):
            if H % cand == 0:
                TH = cand
                break
    # Batch block: largest divisor of B (<= 8) whose per-step bf16 tiles fit ~4 MiB.
    BB = 1
    for d in range(min(B, 8), 0, -1):
        if B % d:
            continue
        per_step = d * (TH * W * 2 + Hs * W * 2 + 2 * Hs * Ws * 2)
        if per_step <= 4 * 1024 * 1024:
            BB = d
            break
    return BB, TH


def _vmem_limit_bytes(BB, TH, Hs, Ws, W):
    """Scoped-VMEM request: double-buffered tiles + scratch + intermediates + headroom."""
    dbl = 2 * (2 * BB * Hs * Ws * 2          # logits block (bf16)
               + BB * TH * W * 2             # gt block (bf16)
               + BB * 2 * 10 * 10 * 4        # minimap logits (f32)
               + Ws * W * 2 + TH * Hs * 2    # Mw^T, Mh (bf16)
               + 10 * TH * 4 + W * 10 * 4    # Th, Tw^T (f32)
               + 8 * 128 * 4)                # output tile
    scratch = BB * Hs * W * 2 + BB * 100 * 4
    live = 8 * TH * W * 4                    # elementwise intermediates (d, nll, masks, ...)
    est = 2 * (dbl + scratch + live)         # 2x headroom for layout padding / compiler temps
    return int(min(64 * 1024 * 1024, max(16 * 1024 * 1024, est)))


def _softplus(x):
    # stable softplus = max(x,0) + log(1 + exp(-|x|)); transcendentals land on the EUP slot.
    return jnp.maximum(x, 0.0) + jnp.log(1.0 + jnp.exp(-jnp.abs(x)))


def _refer_loss_kernel(src_ref, tgt_ref, mini_ref, mwT_ref, mh_ref, th_ref, twT_ref,
                       out_ref, dlo_sc, tmini_sc, acc_sc, *, bb, hs):
    """Grid step (i, t) handles `bb` images x one H row tile.

    src_ref  : (2, bb*hs, Ws) bf16  pred mask logits, channel outermost
    tgt_ref  : (bb, TH, W)    bf16  gt masks ({0,1})
    mini_ref : (bb, 2, 10,10) f32   minimap logits
    mwT_ref  : (Ws, W) bf16 | mh_ref: (TH, hs) bf16 | th_ref: (10, TH) f32 | twT_ref: (W, 10) f32
    out_ref  : (1, 8, 128) f32  rows 0..3 = [mask_nll, mask_is1, mini_nll, mini_is1]
    dlo_sc   : (bb*hs, W) bf16  W-upsampled channel difference (cached across H tiles)
    tmini_sc : (bb, 10, 10) f32 minimap target accumulator
    acc_sc   : SMEM (2,) f32    mask CE accumulators [nll_sum, is1_sum]
    """
    t = pl.program_id(1)
    n_t = pl.num_programs(1)

    @pl.when(t == 0)
    def _init():
        # one fused W-axis upsample matmul for the whole batch block (bf16, f32 acc)
        dlo = src_ref[1] - src_ref[0]                                    # (bb*hs, Ws)
        dlo_sc[...] = jnp.dot(dlo, mwT_ref[...],
                              preferred_element_type=jnp.float32).astype(jnp.bfloat16)
        tmini_sc[...] = jnp.zeros_like(tmini_sc)
        acc_sc[0] = jnp.float32(0.0)
        acc_sc[1] = jnp.float32(0.0)

    mh = mh_ref[...]            # (TH, hs) bf16
    th = th_ref[...]            # (10, TH) f32
    twT = twT_ref[...]          # (W, 10)  f32

    mask_nll = 0.0
    mask_is1 = 0.0
    for j in range(bb):         # bb is VMEM-budget bounded; short static unroll
        # H-axis upsample of the channel difference for this row tile
        d = jnp.dot(mh, dlo_sc[j * hs:(j + 1) * hs, :],
                    preferred_element_type=jnp.float32)                  # (TH, W) f32
        tgt = tgt_ref[j].astype(jnp.float32)                             # (TH, W) {0,1}
        is1 = tgt.astype(jnp.int32) == 1                                 # .long() semantics
        nll = _softplus(jnp.where(is1, -d, d))                           # CE nll per pixel
        mask_nll += W0 * jnp.sum(nll) + (W1 - W0) * jnp.sum(jnp.where(is1, nll, 0.0))
        mask_is1 += jnp.sum(is1.astype(jnp.float32))
        # minimap target partial sum (f32, same op order as reference -> trunc-compare safe)
        tmini_sc[j] = tmini_sc[j] + jnp.dot(
            jnp.dot(th, tgt, preferred_element_type=jnp.float32), twT,
            preferred_element_type=jnp.float32)                          # (10, 10)

    acc_sc[0] += mask_nll
    acc_sc[1] += mask_is1

    @pl.when(t == n_t - 1)
    def _finalize():
        mini_nll = 0.0
        mini_is1 = 0.0
        for j in range(bb):
            tm = tmini_sc[j]                                             # (10, 10)
            m1 = tm.astype(jnp.int32) == 1                               # .long() semantics
            dm = mini_ref[j, 1] - mini_ref[j, 0]                         # (10, 10)
            nm = _softplus(jnp.where(m1, -dm, dm))
            mini_nll += W0 * jnp.sum(nm) + (W1 - W0) * jnp.sum(jnp.where(m1, nm, 0.0))
            mini_is1 += jnp.sum(m1.astype(jnp.float32))
        row = jax.lax.broadcasted_iota(jnp.int32, (8, 128), 0)
        out_ref[0] = (jnp.where(row == 0, acc_sc[0], 0.0)
                      + jnp.where(row == 1, acc_sc[1], 0.0)
                      + jnp.where(row == 2, mini_nll, 0.0)
                      + jnp.where(row == 3, mini_is1, 0.0))


def referring_criterion_loss(pred_masks, pred_logits, nt_label, target_masks, target_nts):
    """Equivalent of ReferringCriterion.forward -> {'loss_mask': scalar}."""
    B, C, Hs, Ws = pred_masks.shape
    assert C == 2
    H, W = target_masks.shape[-2], target_masks.shape[-1]
    N = pred_logits.shape[1]
    assert N == 100, "pred_logits minimap expects 100 positions (10x10)"

    mh = _interp_matrix(H, Hs)            # (H, Hs)
    mwT = _interp_matrix(W, Ws).T         # (Ws, W)
    th = _interp_matrix(10, H)            # (10, H)
    twT = _interp_matrix(10, W).T         # (W, 10)

    BB, TH = _choose_tiles(B, H, W, Hs, Ws)
    NB, NH = B // BB, H // TH

    # channel-outermost logits: z1 - z0 is a single elementwise op in-kernel (no reshape)
    src3 = jnp.transpose(pred_masks, (1, 0, 2, 3)).reshape(2, B * Hs, Ws).astype(jnp.bfloat16)
    # gt masks as bf16: {0,1} exactly representable -> lossless, half the DMA bytes
    tgt = target_masks.reshape(B, H, W).astype(jnp.bfloat16)
    # permute(0,2,1) then view the 100 positions as 10x10 (row-major = flatten(start_dim=1))
    mini = jnp.transpose(pred_logits.astype(jnp.float32), (0, 2, 1)).reshape(B, 2, 10, 10)

    out = pl.pallas_call(
        functools.partial(_refer_loss_kernel, bb=BB, hs=Hs),
        out_shape=jax.ShapeDtypeStruct((NB, 8, 128), jnp.float32),
        grid=(NB, NH),
        in_specs=[
            pl.BlockSpec((2, BB * Hs, Ws), lambda i, t: (0, i, 0)),      # logits (bf16)
            pl.BlockSpec((BB, TH, W), lambda i, t: (i, t, 0)),           # gt masks (bf16)
            pl.BlockSpec((BB, 2, 10, 10), lambda i, t: (i, 0, 0, 0)),    # minimap logits
            pl.BlockSpec((Ws, W), lambda i, t: (0, 0)),                  # Mw^T (bf16)
            pl.BlockSpec((TH, Hs), lambda i, t: (t, 0)),                 # Mh row tile (bf16)
            pl.BlockSpec((10, TH), lambda i, t: (0, t)),                 # Th col tile (f32)
            pl.BlockSpec((W, 10), lambda i, t: (0, 0)),                  # Tw^T (f32)
        ],
        out_specs=pl.BlockSpec((1, 8, 128), lambda i, t: (i, 0, 0)),
        scratch_shapes=[
            pltpu.VMEM((BB * Hs, W), jnp.bfloat16),   # W-upsampled channel difference
            pltpu.VMEM((BB, 10, 10), jnp.float32),    # minimap target accumulator
            pltpu.SMEM((2,), jnp.float32),            # mask CE [nll_sum, is1_sum]
        ],
        compiler_params=pltpu.CompilerParams(
            dimension_semantics=("parallel", "arbitrary"),
            vmem_limit_bytes=_vmem_limit_bytes(BB, TH, Hs, Ws, W)),
    )(src3, tgt, mini, mwT.astype(jnp.bfloat16), mh.astype(jnp.bfloat16), th, twT)

    s = jnp.sum(out[:, :4, 0], axis=0)    # [mask_nll, mask_is1, mini_nll, mini_is1]
    # weight sums reconstructed analytically: sum(w) = W0*N + (W1-W0)*count(target==1)
    mask_w = W0 * (B * H * W) + (W1 - W0) * s[1]
    mini_w = W0 * (B * 100) + (W1 - W0) * s[3]

    # nt (empty) loss: B x 2 scalars -> plain JAX in the wrapper
    z = nt_label.astype(jnp.float32)
    t1 = target_nts.astype(jnp.int32) == 1
    dn = z[:, 1] - z[:, 0]
    nlln = _softplus(jnp.where(t1, -dn, dn))
    wn = jnp.where(t1, W1, W0)
    loss_nt = jnp.sum(wn * nlln) / jnp.sum(wn)

    # PyTorch weighted-mean CE = sum(w[t]*nll) / sum(w[t])
    loss = s[0] / mask_w + 0.1 * (s[2] / mini_w) + 0.1 * loss_nt
    return {'loss_mask': loss}


# ------------------------- pure-JAX reference (for correctness check) --------------------------
def _reference_loss(pred_masks, pred_logits, nt_label, target_masks, target_nts):
    B, _, Hs, Ws = pred_masks.shape
    H, W = target_masks.shape[-2], target_masks.shape[-1]
    hp = jax.lax.Precision.HIGHEST
    mh, mw = _interp_matrix(H, Hs), _interp_matrix(W, Ws)
    th, tw = _interp_matrix(10, H), _interp_matrix(10, W)

    def wce(logits, t_idx):  # logits: (B, 2, *S), t_idx: (B, *S)
        lse = jax.scipy.special.logsumexp(logits, axis=1)
        zt = jnp.take_along_axis(logits, t_idx[:, None], axis=1)[:, 0]
        w = jnp.where(t_idx == 1, W1, W0)
        return jnp.sum(w * (lse - zt)) / jnp.sum(w)

    up = jnp.einsum('hH,bcHW->bchW', mh, pred_masks, precision=hp)
    up = jnp.einsum('bchW,wW->bchw', up, mw, precision=hp)
    loss_m = wce(up, target_masks[:, 0].astype(jnp.int32))

    tmini = jnp.einsum('hH,bHW->bhW', th, target_masks[:, 0], precision=hp)
    tmini = jnp.einsum('bhW,wW->bhw', tmini, tw, precision=hp).reshape(B, 100)
    loss_mini = wce(jnp.transpose(pred_logits, (0, 2, 1)), tmini.astype(jnp.int32))

    loss_nt = wce(nt_label, target_nts.astype(jnp.int32))
    return loss_m + 0.1 * loss_mini + 0.1 * loss_nt


if __name__ == "__main__":
    # TODO(synk): nested_tensor_from_tensor_list ragged padding is assumed already applied
    # (all gt masks share H, W here); torch.jit.script wrapper has no Pallas equivalent (no-op).
    B, Hs, Ws, H, W, N = 2, 16, 16, 30, 30, 100
    key = jax.random.PRNGKey(0)
    k0, k1, k2, k3, k4 = jax.random.split(key, 5)
    pred_masks = jax.random.normal(k0, (B, 2, Hs, Ws), jnp.float32)
    pred_logits = jax.random.normal(k1, (B, N, 2), jnp.float32)
    nt_label = jax.random.normal(k2, (B, 2), jnp.float32)
    gt_masks = (jax.random.uniform(k3, (B, 1, H, W)) > 0.5).astype(jnp.float32)
    empty = jax.random.bernoulli(k4, 0.5, (B,)).astype(jnp.int32)

    out = referring_criterion_loss(pred_masks, pred_logits, nt_label, gt_masks, empty)
    loss = jax.block_until_ready(out['loss_mask'])

    ref = _reference_loss(pred_masks, pred_logits, nt_label, gt_masks, empty)
    # tolerance covers the bf16 logit-upsample path (f32 accumulation keeps it well inside)
    np.testing.assert_allclose(np.asarray(loss), np.asarray(ref), rtol=2e-3, atol=5e-4)
    print("KERNEL_OK")
</pallas_src>

<mosaic_0001>
module attributes {stable_mosaic.version = 11 : i64} {
  func.func @_refer_loss_kernel(%arg0: i32, %arg1: i32, %arg2: memref<2x32x16xbf16, #tpu.memory_space<vmem>>, %arg3: memref<2x30x30xbf16, #tpu.memory_space<vmem>>, %arg4: memref<2x2x10x10xf32, #tpu.memory_space<vmem>>, %arg5: memref<16x30xbf16, #tpu.memory_space<vmem>>, %arg6: memref<30x16xbf16, #tpu.memory_space<vmem>>, %arg7: memref<10x30xf32, #tpu.memory_space<vmem>>, %arg8: memref<30x10xf32, #tpu.memory_space<vmem>>, %arg9: memref<1x8x128xf32, #tpu.memory_space<vmem>>, %arg10: memref<32x30xbf16, #tpu.memory_space<vmem>>, %arg11: memref<2x10x10xf32, #tpu.memory_space<vmem>>, %arg12: memref<2xf32, #tpu.memory_space<smem>>) attributes {dimension_semantics = [#tpu.dimension_semantics<parallel>, #tpu.dimension_semantics<arbitrary>], iteration_bounds = array<i64: 1, 1>, scalar_prefetch = 0 : i64, scratch_operands = 3 : i64, tpu.core_type = #tpu.core_type<tc>, window_params = [{transform_indices = @transform_0, window_bounds = array<i64: 2, 32, 16>}, {transform_indices = @transform_1, window_bounds = array<i64: 2, 30, 30>}, {transform_indices = @transform_2, window_bounds = array<i64: 2, 2, 10, 10>}, {pipeline_mode = #tpu.pipeline_mode<synchronous>, transform_indices = @transform_3, window_bounds = array<i64: 16, 30>}, {transform_indices = @transform_4, window_bounds = array<i64: 30, 16>}, {transform_indices = @transform_5, window_bounds = array<i64: 10, 30>}, {pipeline_mode = #tpu.pipeline_mode<synchronous>, transform_indices = @transform_6, window_bounds = array<i64: 30, 10>}, {transform_indices = @transform_7, window_bounds = array<i64: 1, 8, 128>}]} {
    %c0_i32 = arith.constant 0 : i32
    %0 = arith.cmpi eq, %arg1, %c0_i32 : i32
    %1 = arith.extui %0 : i1 to i32
    %c0_i32_0 = arith.constant 0 : i32
    %2 = arith.cmpi ne, %1, %c0_i32_0 : i32
    scf.if %2 {
      %c1_60 = arith.constant 1 : index
      %c0_61 = arith.constant 0 : index
      %c0_62 = arith.constant 0 : index
      %115 = vector.load %arg2[%c1_60, %c0_61, %c0_62] : memref<2x32x16xbf16, #tpu.memory_space<vmem>>, vector<1x32x16xbf16>
      %116 = vector.shape_cast %115 : vector<1x32x16xbf16> to vector<32x16xbf16>
      %c0_63 = arith.constant 0 : index
      %c0_64 = arith.constant 0 : index
      %c0_65 = arith.constant 0 : index
      %117 = vector.load %arg2[%c0_63, %c0_64, %c0_65] : memref<2x32x16xbf16, #tpu.memory_space<vmem>>, vector<1x32x16xbf16>
      %118 = vector.shape_cast %117 : vector<1x32x16xbf16> to vector<32x16xbf16>
      %119 = arith.subf %116, %118 : vector<32x16xbf16>
      %c0_66 = arith.constant 0 : index
      %c0_67 = arith.constant 0 : index
      %120 = vector.load %arg5[%c0_66, %c0_67] : memref<16x30xbf16, #tpu.memory_space<vmem>>, vector<16x30xbf16>
      %cst_68 = arith.constant dense<0.000000e+00> : vector<32x30xf32>
      %121 = tpu.matmul %119, %120, %cst_68 {dimension_numbers = #tpu.dot_dimension_numbers<[1], [0], [0], [1], [0, 0, 1, 1], [], []>} : vector<32x16xbf16>, vector<16x30xbf16>, vector<32x30xf32> -> vector<32x30xf32>
      %122 = arith.truncf %121 : vector<32x30xf32> to vector<32x30xbf16>
      %c0_69 = arith.constant 0 : index
      %c0_70 = arith.constant 0 : index
      %123 = vector.load %arg10[%c0_69, %c0_70] : memref<32x30xbf16, #tpu.memory_space<vmem>>, vector<32x30xbf16>
      tpu.vector_store %arg10[%c0_69, %c0_70], %122 {strides = array<i32>} : memref<32x30xbf16, #tpu.memory_space<vmem>>, vector<32x30xbf16>,
      %cst_71 = arith.constant 0.000000e+00 : f32
      %124 = vector.broadcast %cst_71 : f32 to vector<2x10x10xf32>
      %c0_72 = arith.constant 0 : index
      %c0_73 = arith.constant 0 : index
      %c0_74 = arith.constant 0 : index
      %125 = vector.load %arg11[%c0_72, %c0_73, %c0_74] : memref<2x10x10xf32, #tpu.memory_space<vmem>>, vector<2x10x10xf32>
      tpu.vector_store %arg11[%c0_72, %c0_73, %c0_74], %124 {strides = array<i32>} : memref<2x10x10xf32, #tpu.memory_space<vmem>>, vector<2x10x10xf32>,
      %cst_75 = arith.constant 0.000000e+00 : f32
      %c0_76 = arith.constant 0 : index
      %126 = memref.load %arg12[%c0_76] : memref<2xf32, #tpu.memory_space<smem>>
      memref.store %cst_75, %arg12[%c0_76] : memref<2xf32, #tpu.memory_space<smem>>
      %cst_77 = arith.constant 0.000000e+00 : f32
      %c1_78 = arith.constant 1 : index
      %127 = memref.load %arg12[%c1_78] : memref<2xf32, #tpu.memory_space<smem>>
      memref.store %cst_77, %arg12[%c1_78] : memref<2xf32, #tpu.memory_space<smem>>
    } else {
    }
    %c0 = arith.constant 0 : index
    %c0_1 = arith.constant 0 : index
    %3 = vector.load %arg6[%c0, %c0_1] : memref<30x16xbf16, #tpu.memory_space<vmem>>, vector<30x16xbf16>
    %c0_2 = arith.constant 0 : index
    %c0_3 = arith.constant 0 : index
    %4 = vector.load %arg7[%c0_2, %c0_3] : memref<10x30xf32, #tpu.memory_space<vmem>>, vector<10x30xf32>
    %c0_4 = arith.constant 0 : index
    %c0_5 = arith.constant 0 : index
    %5 = vector.load %arg8[%c0_4, %c0_5] : memref<30x10xf32, #tpu.memory_space<vmem>>, vector<30x10xf32>
    %c0_6 = arith.constant 0 : index
    %c0_7 = arith.constant 0 : index
    %6 = vector.load %arg10[%c0_6, %c0_7] : memref<32x30xbf16, #tpu.memory_space<vmem>>, vector<16x30xbf16>
    %cst = arith.constant dense<0.000000e+00> : vector<30x30xf32>
    %7 = tpu.matmul %3, %6, %cst {dimension_numbers = #tpu.dot_dimension_numbers<[1], [0], [0], [1], [0, 0, 1, 1], [], []>} : vector<30x16xbf16>, vector<16x30xbf16>, vector<30x30xf32> -> vector<30x30xf32>
    %c0_8 = arith.constant 0 : index
    %c0_9 = arith.constant 0 : index
    %c0_10 = arith.constant 0 : index
    %8 = vector.load %arg3[%c0_8, %c0_9, %c0_10] : memref<2x30x30xbf16, #tpu.memory_space<vmem>>, vector<1x30x30xbf16>
    %9 = vector.shape_cast %8 : vector<1x30x30xbf16> to vector<30x30xbf16>
    %10 = arith.extf %9 : vector<30x30xbf16> to vector<30x30xf32>
    %11 = arith.fptosi %10 : vector<30x30xf32> to vector<30x30xi32>
    %c1_i32 = arith.constant 1 : i32
    %12 = vector.broadcast %c1_i32 : i32 to vector<30x30xi32>
    %13 = arith.cmpi eq, %11, %12 : vector<30x30xi32>
    %cst_11 = arith.constant 0.000000e+00 : f32
    %14 = vector.broadcast %cst_11 : f32 to vector<30x30xf32>
    %15 = arith.subf %14, %7 : vector<30x30xf32>
    %16 = arith.select %13, %15, %7 : vector<30x30xi1>, vector<30x30xf32>
    %cst_12 = arith.constant 0.000000e+00 : f32
    %17 = vector.broadcast %cst_12 : f32 to vector<30x30xf32>
    %18 = arith.maximumf %16, %17 : vector<30x30xf32>
    %19 = math.absf %16 : vector<30x30xf32>
    %cst_13 = arith.constant 0.000000e+00 : f32
    %20 = vector.broadcast %cst_13 : f32 to vector<30x30xf32>
    %21 = arith.subf %20, %19 : vector<30x30xf32>
    %22 = math.exp %21 : vector<30x30xf32>
    %cst_14 = arith.constant 1.000000e+00 : f32
    %23 = vector.broadcast %cst_14 : f32 to vector<30x30xf32>
    %24 = arith.addf %23, %22 : vector<30x30xf32>
    %25 = math.log %24 : vector<30x30xf32>
    %26 = arith.addf %18, %25 : vector<30x30xf32>
    %27 = vector.shape_cast %26 : vector<30x30xf32> to vector<1x30x30xf32>
    %cst_15 = arith.constant dense<0.000000e+00> : vector<1xf32>
    %28 = vector.multi_reduction <add>, %27, %cst_15 [1, 2] : vector<1x30x30xf32> to vector<1xf32>
    %29 = vector.shape_cast %28 : vector<1xf32> to vector<1x1x1xf32>
    %30 = vector.extract %29[0, 0, 0] : f32 from vector<1x1x1xf32>
    %cst_16 = arith.constant 0.899999976 : f32
    %31 = arith.mulf %cst_16, %30 : f32
    %cst_17 = arith.constant 0.000000e+00 : f32
    %32 = vector.broadcast %cst_17 : f32 to vector<30x30xf32>
    %33 = arith.select %13, %26, %32 : vector<30x30xi1>, vector<30x30xf32>
    %34 = vector.shape_cast %33 : vector<30x30xf32> to vector<1x30x30xf32>
    %cst_18 = arith.constant dense<0.000000e+00> : vector<1xf32>
    %35 = vector.multi_reduction <add>, %34, %cst_18 [1, 2] : vector<1x30x30xf32> to vector<1xf32>
    %36 = vector.shape_cast %35 : vector<1xf32> to vector<1x1x1xf32>
    %37 = vector.extract %36[0, 0, 0] : f32 from vector<1x1x1xf32>
    %cst_19 = arith.constant 2.000000e-01 : f32
    %38 = arith.mulf %cst_19, %37 : f32
    %39 = arith.addf %31, %38 : f32
    %cst_20 = arith.constant 0.000000e+00 : f32
    %40 = arith.addf %cst_20, %39 : f32
    %41 = arith.extui %13 : vector<30x30xi1> to vector<30x30xi32>
    %42 = arith.sitofp %41 : vector<30x30xi32> to vector<30x30xf32>
    %43 = vector.shape_cast %42 : vector<30x30xf32> to vector<1x30x30xf32>
    %cst_21 = arith.constant dense<0.000000e+00> : vector<1xf32>
    %44 = vector.multi_reduction <add>, %43, %cst_21 [1, 2] : vector<1x30x30xf32> to vector<1xf32>
    %45 = vector.shape_cast %44 : vector<1xf32> to vector<1x1x1xf32>
    %46 = vector.extract %45[0, 0, 0] : f32 from vector<1x1x1xf32>
    %cst_22 = arith.constant 0.000000e+00 : f32
    %47 = arith.addf %cst_22, %46 : f32
    %c0_23 = arith.constant 0 : index
    %c0_24 = arith.constant 0 : index
    %c0_25 = arith.constant 0 : index
    %48 = vector.load %arg11[%c0_23, %c0_24, %c0_25] : memref<2x10x10xf32, #tpu.memory_space<vmem>>, vector<1x10x10xf32>
    %49 = vector.shape_cast %48 : vector<1x10x10xf32> to vector<10x10xf32>
    %cst_26 = arith.constant dense<0.000000e+00> : vector<10x30xf32>
    %50 = tpu.matmul %4, %10, %cst_26 {dimension_numbers = #tpu.dot_dimension_numbers<[1], [0], [0], [1], [0, 0, 1, 1], [], []>} : vector<10x30xf32>, vector<30x30xf32>, vector<10x30xf32> -> vector<10x30xf32>
    %cst_27 = arith.constant dense<0.000000e+00> : vector<10x10xf32>
    %51 = tpu.matmul %50, %5, %cst_27 {dimension_numbers = #tpu.dot_dimension_numbers<[1], [0], [0], [1], [0, 0, 1, 1], [], []>} : vector<10x30xf32>, vector<30x10xf32>, vector<10x10xf32> -> vector<10x10xf32>
    %52 = arith.addf %49, %51 : vector<10x10xf32>
    %c0_28 = arith.constant 0 : index
    %c0_29 = arith.constant 0 : index
    %c0_30 = arith.constant 0 : index
    %53 = vector.load %arg11[%c0_28, %c0_29, %c0_30] : memref<2x10x10xf32, #tpu.memory_space<vmem>>, vector<1x10x10xf32>
    %54 = vector.shape_cast %53 : vector<1x10x10xf32> to vector<10x10xf32>
    %55 = vector.shape_cast %52 : vector<10x10xf32> to vector<1x10x10xf32>
    tpu.vector_store %arg11[%c0_28, %c0_29, %c0_30], %55 {strides = array<i32>} : memref<2x10x10xf32, #tpu.memory_space<vmem>>, vector<1x10x10xf32>,
    %c16 = arith.constant 16 : index
    %c0_31 = arith.constant 0 : index
    %56 = vector.load %arg10[%c16, %c0_31] : memref<32x30xbf16, #tpu.memory_space<vmem>>, vector<16x30xbf16>
    %cst_32 = arith.constant dense<0.000000e+00> : vector<30x30xf32>
    %57 = tpu.matmul %3, %56, %cst_32 {dimension_numbers = #tpu.dot_dimension_numbers<[1], [0], [0], [1], [0, 0, 1, 1], [], []>} : vector<30x16xbf16>, vector<16x30xbf16>, vector<30x30xf32> -> vector<30x30xf32>
    %c1 = arith.constant 1 : index
    %c0_33 = arith.constant 0 : index
    %c0_34 = arith.constant 0 : index
    %58 = vector.load %arg3[%c1, %c0_33, %c0_34] : memref<2x30x30xbf16, #tpu.memory_space<vmem>>, vector<1x30x30xbf16>
    %59 = vector.shape_cast %58 : vector<1x30x30xbf16> to vector<30x30xbf16>
    %60 = arith.extf %59 : vector<30x30xbf16> to vector<30x30xf32>
    %61 = arith.fptosi %60 : vector<30x30xf32> to vector<30x30xi32>
    %c1_i32_35 = arith.constant 1 : i32
    %62 = vector.broadcast %c1_i32_35 : i32 to vector<30x30xi32>
    %63 = arith.cmpi eq, %61, %62 : vector<30x30xi32>
    %cst_36 = arith.constant 0.000000e+00 : f32
    %64 = vector.broadcast %cst_36 : f32 to vector<30x30xf32>
    %65 = arith.subf %64, %57 : vector<30x30xf32>
    %66 = arith.select %63, %65, %57 : vector<30x30xi1>, vector<30x30xf32>
    %cst_37 = arith.constant 0.000000e+00 : f32
    %67 = vector.broadcast %cst_37 : f32 to vector<30x30xf32>
    %68 = arith.maximumf %66, %67 : vector<30x30xf32>
    %69 = math.absf %66 : vector<30x30xf32>
    %cst_38 = arith.constant 0.000000e+00 : f32
    %70 = vector.broadcast %cst_38 : f32 to vector<30x30xf32>
    %71 = arith.subf %70, %69 : vector<30x30xf32>
    %72 = math.exp %71 : vector<30x30xf32>
    %cst_39 = arith.constant 1.000000e+00 : f32
    %73 = vector.broadcast %cst_39 : f32 to vector<30x30xf32>
    %74 = arith.addf %73, %72 : vector<30x30xf32>
    %75 = math.log %74 : vector<30x30xf32>
    %76 = arith.addf %68, %75 : vector<30x30xf32>
    %77 = vector.shape_cast %76 : vector<30x30xf32> to vector<1x30x30xf32>
    %cst_40 = arith.constant dense<0.000000e+00> : vector<1xf32>
    %78 = vector.multi_reduction <add>, %77, %cst_40 [1, 2] : vector<1x30x30xf32> to vector<1xf32>
    %79 = vector.shape_cast %78 : vector<1xf32> to vector<1x1x1xf32>
    %80 = vector.extract %79[0, 0, 0] : f32 from vector<1x1x1xf32>
    %cst_41 = arith.constant 0.899999976 : f32
    %81 = arith.mulf %cst_41, %80 : f32
    %cst_42 = arith.constant 0.000000e+00 : f32
    %82 = vector.broadcast %cst_42 : f32 to vector<30x30xf32>
    %83 = arith.select %63, %76, %82 : vector<30x30xi1>, vector<30x30xf32>
    %84 = vector.shape_cast %83 : vector<30x30xf32> to vector<1x30x30xf32>
    %cst_43 = arith.constant dense<0.000000e+00> : vector<1xf32>
    %85 = vector.multi_reduction <add>, %84, %cst_43 [1, 2] : vector<1x30x30xf32> to vector<1xf32>
    %86 = vector.shape_cast %85 : vector<1xf32> to vector<1x1x1xf32>
    %87 = vector.extract %86[0, 0, 0] : f32 from vector<1x1x1xf32>
    %cst_44 = arith.constant 2.000000e-01 : f32
    %88 = arith.mulf %cst_44, %87 : f32
    %89 = arith.addf %81, %88 : f32
    %90 = arith.addf %40, %89 : f32
    %91 = arith.extui %63 : vector<30x30xi1> to vector<30x30xi32>
    %92 = arith.sitofp %91 : vector<30x30xi32> to vector<30x30xf32>
    %93 = vector.shape_cast %92 : vector<30x30xf32> to vector<1x30x30xf32>
    %cst_45 = arith.constant dense<0.000000e+00> : vector<1xf32>
    %94 = vector.multi_reduction <add>, %93, %cst_45 [1, 2] : vector<1x30x30xf32> to vector<1xf32>
    %95 = vector.shape_cast %94 : vector<1xf32> to vector<1x1x1xf32>
    %96 = vector.extract %95[0, 0, 0] : f32 from vector<1x1x1xf32>
    %97 = arith.addf %47, %96 : f32
    %c1_46 = arith.constant 1 : index
    %c0_47 = arith.constant 0 : index
    %c0_48 = arith.constant 0 : index
    %98 = vector.load %arg11[%c1_46, %c0_47, %c0_48] : memref<2x10x10xf32, #tpu.memory_space<vmem>>, vector<1x10x10xf32>
    %99 = vector.shape_cast %98 : vector<1x10x10xf32> to vector<10x10xf32>
    %cst_49 = arith.constant dense<0.000000e+00> : vector<10x30xf32>
    %100 = tpu.matmul %4, %60, %cst_49 {dimension_numbers = #tpu.dot_dimension_numbers<[1], [0], [0], [1], [0, 0, 1, 1], [], []>} : vector<10x30xf32>, vector<30x30xf32>, vector<10x30xf32> -> vector<10x30xf32>
    %cst_50 = arith.constant dense<0.000000e+00> : vector<10x10xf32>
    %101 = tpu.matmul %100, %5, %cst_50 {dimension_numbers = #tpu.dot_dimension_numbers<[1], [0], [0], [1], [0, 0, 1, 1], [], []>} : vector<10x30xf32>, vector<30x10xf32>, vector<10x10xf32> -> vector<10x10xf32>
    %102 = arith.addf %99, %101 : vector<10x10xf32>
    %c1_51 = arith.constant 1 : index
    %c0_52 = arith.constant 0 : index
    %c0_53 = arith.constant 0 : index
    %103 = vector.load %arg11[%c1_51, %c0_52, %c0_53] : memref<2x10x10xf32, #tpu.memory_space<vmem>>, vector<1x10x10xf32>
    %104 = vector.shape_cast %103 : vector<1x10x10xf32> to vector<10x10xf32>
    %105 = vector.shape_cast %102 : vector<10x10xf32> to vector<1x10x10xf32>
    tpu.vector_store %arg11[%c1_51, %c0_52, %c0_53], %105 {strides = array<i32>} : memref<2x10x10xf32, #tpu.memory_space<vmem>>, vector<1x10x10xf32>,
    %c0_54 = arith.constant 0 : index
    %106 = memref.load %arg12[%c0_54] : memref<2xf32, #tpu.memory_space<smem>>
    %107 = arith.addf %106, %90 : f32
    %c0_55 = arith.constant 0 : index
    %108 = memref.load %arg12[%c0_55] : memref<2xf32, #tpu.memory_space<smem>>
    memref.store %107, %arg12[%c0_55] : memref<2xf32, #tpu.memory_space<smem>>
    %c1_56 = arith.constant 1 : index
    %109 = memref.load %arg12[%c1_56] : memref<2xf32, #tpu.memory_space<smem>>
    %110 = arith.addf %109, %97 : f32
    %c1_57 = arith.constant 1 : index
    %111 = memref.load %arg12[%c1_57] : memref<2xf32, #tpu.memory_space<smem>>
    memref.store %110, %arg12[%c1_57] : memref<2xf32, #tpu.memory_space<smem>>
    %c0_i32_58 = arith.constant 0 : i32
    %112 = arith.cmpi eq, %arg1, %c0_i32_58 : i32
    %113 = arith.extui %112 : i1 to i32
    %c0_i32_59 = arith.constant 0 : i32
    %114 = arith.cmpi ne, %113, %c0_i32_59 : i32
    scf.if %114 {
      %c0_60 = arith.constant 0 : index
      %c0_61 = arith.constant 0 : index
      %c0_62 = arith.constant 0 : index
      %115 = vector.load %arg11[%c0_60, %c0_61, %c0_62] : memref<2x10x10xf32, #tpu.memory_space<vmem>>, vector<1x10x10xf32>
      %116 = vector.shape_cast %115 : vector<1x10x10xf32> to vector<10x10xf32>
      %117 = arith.fptosi %116 : vector<10x10xf32> to vector<10x10xi32>
      %c1_i32_63 = arith.constant 1 : i32
      %118 = vector.broadcast %c1_i32_63 : i32 to vector<10x10xi32>
      %119 = arith.cmpi eq, %117, %118 : vector<10x10xi32>
      %c0_64 = arith.constant 0 : index
      %c1_65 = arith.constant 1 : index
      %c0_66 = arith.constant 0 : index
      %c0_67 = arith.constant 0 : index
      %120 = vector.load %arg4[%c0_64, %c1_65, %c0_66, %c0_67] : memref<2x2x10x10xf32, #tpu.memory_space<vmem>>, vector<1x1x10x10xf32>
      %121 = vector.shape_cast %120 : vector<1x1x10x10xf32> to vector<10x10xf32>
      %c0_68 = arith.constant 0 : index
      %c0_69 = arith.constant 0 : index
      %c0_70 = arith.constant 0 : index
      %c0_71 = arith.constant 0 : index
      %122 = vector.load %arg4[%c0_68, %c0_69, %c0_70, %c0_71] : memref<2x2x10x10xf32, #tpu.memory_space<vmem>>, vector<1x1x10x10xf32>
      %123 = vector.shape_cast %122 : vector<1x1x10x10xf32> to vector<10x10xf32>
      %124 = arith.subf %121, %123 : vector<10x10xf32>
      %cst_72 = arith.constant 0.000000e+00 : f32
      %125 = vector.broadcast %cst_72 : f32 to vector<10x10xf32>
      %126 = arith.subf %125, %124 : vector<10x10xf32>
      %127 = arith.select %119, %126, %124 : vector<10x10xi1>, vector<10x10xf32>
      %cst_73 = arith.constant 0.000000e+00 : f32
      %128 = vector.broadcast %cst_73 : f32 to vector<10x10xf32>
      %129 = arith.maximumf %127, %128 : vector<10x10xf32>
      %130 = math.absf %127 : vector<10x10xf32>
      %cst_74 = arith.constant 0.000000e+00 : f32
      %131 = vector.broadcast %cst_74 : f32 to vector<10x10xf32>
      %132 = arith.subf %131, %130 : vector<10x10xf32>
      %133 = math.exp %132 : vector<10x10xf32>
      %cst_75 = arith.constant 1.000000e+00 : f32
      %134 = vector.broadcast %cst_75 : f32 to vector<10x10xf32>
      %135 = arith.addf %134, %133 : vector<10x10xf32>
      %136 = math.log %135 : vector<10x10xf32>
      %137 = arith.addf %129, %136 : vector<10x10xf32>
      %138 = vector.shape_cast %137 : vector<10x10xf32> to vector<1x10x10xf32>
      %cst_76 = arith.constant dense<0.000000e+00> : vector<1xf32>
      %139 = vector.multi_reduction <add>, %138, %cst_76 [1, 2] : vector<1x10x10xf32> to vector<1xf32>
      %140 = vector.shape_cast %139 : vector<1xf32> to vector<1x1x1xf32>
      %141 = vector.extract %140[0, 0, 0] : f32 from vector<1x1x1xf32>
      %cst_77 = arith.constant 0.899999976 : f32
      %142 = arith.mulf %cst_77, %141 : f32
      %cst_78 = arith.constant 0.000000e+00 : f32
      %143 = vector.broadcast %cst_78 : f32 to vector<10x10xf32>
      %144 = arith.select %119, %137, %143 : vector<10x10xi1>, vector<10x10xf32>
      %145 = vector.shape_cast %144 : vector<10x10xf32> to vector<1x10x10xf32>
      %cst_79 = arith.constant dense<0.000000e+00> : vector<1xf32>
      %146 = vector.multi_reduction <add>, %145, %cst_79 [1, 2] : vector<1x10x10xf32> to vector<1xf32>
      %147 = vector.shape_cast %146 : vector<1xf32> to vector<1x1x1xf32>
      %148 = vector.extract %147[0, 0, 0] : f32 from vector<1x1x1xf32>
      %cst_80 = arith.constant 2.000000e-01 : f32
      %149 = arith.mulf %cst_80, %148 : f32
      %150 = arith.addf %142, %149 : f32
      %cst_81 = arith.constant 0.000000e+00 : f32
      %151 = arith.addf %cst_81, %150 : f32
      %152 = arith.extui %119 : vector<10x10xi1> to vector<10x10xi32>
      %153 = arith.sitofp %152 : vector<10x10xi32> to vector<10x10xf32>
      %154 = vector.shape_cast %153 : vector<10x10xf32> to vector<1x10x10xf32>
      %cst_82 = arith.constant dense<0.000000e+00> : vector<1xf32>
      %155 = vector.multi_reduction <add>, %154, %cst_82 [1, 2] : vector<1x10x10xf32> to vector<1xf32>
      %156 = vector.shape_cast %155 : vector<1xf32> to vector<1x1x1xf32>
      %157 = vector.extract %156[0, 0, 0] : f32 from vector<1x1x1xf32>
      %cst_83 = arith.constant 0.000000e+00 : f32
      %158 = arith.addf %cst_83, %157 : f32
      %c1_84 = arith.constant 1 : index
      %c0_85 = arith.constant 0 : index
      %c0_86 = arith.constant 0 : index
      %159 = vector.load %arg11[%c1_84, %c0_85, %c0_86] : memref<2x10x10xf32, #tpu.memory_space<vmem>>, vector<1x10x10xf32>
      %160 = vector.shape_cast %159 : vector<1x10x10xf32> to vector<10x10xf32>
      %161 = arith.fptosi %160 : vector<10x10xf32> to vector<10x10xi32>
      %c1_i32_87 = arith.constant 1 : i32
      %162 = vector.broadcast %c1_i32_87 : i32 to vector<10x10xi32>
      %163 = arith.cmpi eq, %161, %162 : vector<10x10xi32>
      %c1_88 = arith.constant 1 : index
      %c1_89 = arith.constant 1 : index
      %c0_90 = arith.constant 0 : index
      %c0_91 = arith.constant 0 : index
      %164 = vector.load %arg4[%c1_88, %c1_89, %c0_90, %c0_91] : memref<2x2x10x10xf32, #tpu.memory_space<vmem>>, vector<1x1x10x10xf32>
      %165 = vector.shape_cast %164 : vector<1x1x10x10xf32> to vector<10x10xf32>
      %c1_92 = arith.constant 1 : index
      %c0_93 = arith.constant 0 : index
      %c0_94 = arith.constant 0 : index
      %c0_95 = arith.constant 0 : index
      %166 = vector.load %arg4[%c1_92, %c0_93, %c0_94, %c0_95] : memref<2x2x10x10xf32, #tpu.memory_space<vmem>>, vector<1x1x10x10xf32>
      %167 = vector.shape_cast %166 : vector<1x1x10x10xf32> to vector<10x10xf32>
      %168 = arith.subf %165, %167 : vector<10x10xf32>
      %cst_96 = arith.constant 0.000000e+00 : f32
      %169 = vector.broadcast %cst_96 : f32 to vector<10x10xf32>
      %170 = arith.subf %169, %168 : vector<10x10xf32>
      %171 = arith.select %163, %170, %168 : vector<10x10xi1>, vector<10x10xf32>
      %cst_97 = arith.constant 0.000000e+00 : f32
      %172 = vector.broadcast %cst_97 : f32 to vector<10x10xf32>
      %173 = arith.maximumf %171, %172 : vector<10x10xf32>
      %174 = math.absf %171 : vector<10x10xf32>
      %cst_98 = arith.constant 0.000000e+00 : f32
      %175 = vector.broadcast %cst_98 : f32 to vector<10x10xf32>
      %176 = arith.subf %175, %174 : vector<10x10xf32>
      %177 = math.exp %176 : vector<10x10xf32>
      %cst_99 = arith.constant 1.000000e+00 : f32
      %178 = vector.broadcast %cst_99 : f32 to vector<10x10xf32>
      %179 = arith.addf %178, %177 : vector<10x10xf32>
      %180 = math.log %179 : vector<10x10xf32>
      %181 = arith.addf %173, %180 : vector<10x10xf32>
      %182 = vector.shape_cast %181 : vector<10x10xf32> to vector<1x10x10xf32>
      %cst_100 = arith.constant dense<0.000000e+00> : vector<1xf32>
      %183 = vector.multi_reduction <add>, %182, %cst_100 [1, 2] : vector<1x10x10xf32> to vector<1xf32>
      %184 = vector.shape_cast %183 : vector<1xf32> to vector<1x1x1xf32>
      %185 = vector.extract %184[0, 0, 0] : f32 from vector<1x1x1xf32>
      %cst_101 = arith.constant 0.899999976 : f32
      %186 = arith.mulf %cst_101, %185 : f32
      %cst_102 = arith.constant 0.000000e+00 : f32
      %187 = vector.broadcast %cst_102 : f32 to vector<10x10xf32>
      %188 = arith.select %163, %181, %187 : vector<10x10xi1>, vector<10x10xf32>
      %189 = vector.shape_cast %188 : vector<10x10xf32> to vector<1x10x10xf32>
      %cst_103 = arith.constant dense<0.000000e+00> : vector<1xf32>
      %190 = vector.multi_reduction <add>, %189, %cst_103 [1, 2] : vector<1x10x10xf32> to vector<1xf32>
      %191 = vector.shape_cast %190 : vector<1xf32> to vector<1x1x1xf32>
      %192 = vector.extract %191[0, 0, 0] : f32 from vector<1x1x1xf32>
      %cst_104 = arith.constant 2.000000e-01 : f32
      %193 = arith.mulf %cst_104, %192 : f32
      %194 = arith.addf %186, %193 : f32
      %195 = arith.addf %151, %194 : f32
      %196 = arith.extui %163 : vector<10x10xi1> to vector<10x10xi32>
      %197 = arith.sitofp %196 : vector<10x10xi32> to vector<10x10xf32>
      %198 = vector.shape_cast %197 : vector<10x10xf32> to vector<1x10x10xf32>
      %cst_105 = arith.constant dense<0.000000e+00> : vector<1xf32>
      %199 = vector.multi_reduction <add>, %198, %cst_105 [1, 2] : vector<1x10x10xf32> to vector<1xf32>
      %200 = vector.shape_cast %199 : vector<1xf32> to vector<1x1x1xf32>
      %201 = vector.extract %200[0, 0, 0] : f32 from vector<1x1x1xf32>
      %202 = arith.addf %158, %201 : f32
      %203 = tpu.iota {dimensions = array<i32: 0>} : vector<8x128xi32>
      %c0_i32_106 = arith.constant 0 : i32
      %204 = vector.broadcast %c0_i32_106 : i32 to vector<8x128xi32>
      %205 = arith.cmpi eq, %203, %204 : vector<8x128xi32>
      %c0_107 = arith.constant 0 : index
      %206 = memref.load %arg12[%c0_107] : memref<2xf32, #tpu.memory_space<smem>>
      %cst_108 = arith.constant 0.000000e+00 : f32
      %207 = vector.broadcast %206 : f32 to vector<8x128xf32>
      %208 = vector.broadcast %cst_108 : f32 to vector<8x128xf32>
      %209 = arith.select %205, %207, %208 : vector<8x128xi1>, vector<8x128xf32>
      %c1_i32_109 = arith.constant 1 : i32
      %210 = vector.broadcast %c1_i32_109 : i32 to vector<8x128xi32>
      %211 = arith.cmpi eq, %203, %210 : vector<8x128xi32>
      %c1_110 = arith.constant 1 : index
      %212 = memref.load %arg12[%c1_110] : memref<2xf32, #tpu.memory_space<smem>>
      %cst_111 = arith.constant 0.000000e+00 : f32
      %213 = vector.broadcast %212 : f32 to vector<8x128xf32>
      %214 = vector.broadcast %cst_111 : f32 to vector<8x128xf32>
      %215 = arith.select %211, %213, %214 : vector<8x128xi1>, vector<8x128xf32>
      %216 = arith.addf %209, %215 : vector<8x128xf32>
      %c2_i32 = arith.constant 2 : i32
      %217 = vector.broadcast %c2_i32 : i32 to vector<8x128xi32>
      %218 = arith.cmpi eq, %203, %217 : vector<8x128xi32>
      %cst_112 = arith.constant 0.000000e+00 : f32
      %219 = vector.broadcast %195 : f32 to vector<8x128xf32>
      %220 = vector.broadcast %cst_112 : f32 to vector<8x128xf32>
      %221 = arith.select %218, %219, %220 : vector<8x128xi1>, vector<8x128xf32>
      %222 = arith.addf %216, %221 : vector<8x128xf32>
      %c3_i32 = arith.constant 3 : i32
      %223 = vector.broadcast %c3_i32 : i32 to vector<8x128xi32>
      %224 = arith.cmpi eq, %203, %223 : vector<8x128xi32>
      %cst_113 = arith.constant 0.000000e+00 : f32
      %225 = vector.broadcast %202 : f32 to vector<8x128xf32>
      %226 = vector.broadcast %cst_113 : f32 to vector<8x128xf32>
      %227 = arith.select %224, %225, %226 : vector<8x128xi1>, vector<8x128xf32>
      %228 = arith.addf %222, %227 : vector<8x128xf32>
      %c0_114 = arith.constant 0 : index
      %c0_115 = arith.constant 0 : index
      %c0_116 = arith.constant 0 : index
      %229 = vector.load %arg9[%c0_114, %c0_115, %c0_116] : memref<1x8x128xf32, #tpu.memory_space<vmem>>, vector<1x8x128xf32>
      %230 = vector.shape_cast %229 : vector<1x8x128xf32> to vector<8x128xf32>
      %231 = vector.shape_cast %228 : vector<8x128xf32> to vector<1x8x128xf32>
      tpu.vector_store %arg9[%c0_114, %c0_115, %c0_116], %231 {strides = array<i32>} : memref<1x8x128xf32, #tpu.memory_space<vmem>>, vector<1x8x128xf32>,
    } else {
    }
    return
  }
  func.func @transform_0(%arg0: i32, %arg1: i32) -> (i32, i32, i32) {
    %c0_i32 = arith.constant 0 : i32
    %c0_i32_0 = arith.constant 0 : i32
    %c0_i32_1 = arith.constant 0 : i32
    return %c0_i32, %arg0, %c0_i32_0 : i32, i32, i32
  }
  func.func @transform_1(%arg0: i32, %arg1: i32) -> (i32, i32, i32) {
    %c0_i32 = arith.constant 0 : i32
    %c0_i32_0 = arith.constant 0 : i32
    return %arg0, %arg1, %c0_i32 : i32, i32, i32
  }
  func.func @transform_2(%arg0: i32, %arg1: i32) -> (i32, i32, i32, i32) {
    %c0_i32 = arith.constant 0 : i32
    %c0_i32_0 = arith.constant 0 : i32
    %c0_i32_1 = arith.constant 0 : i32
    %c0_i32_2 = arith.constant 0 : i32
    return %arg0, %c0_i32, %c0_i32_0, %c0_i32_1 : i32, i32, i32, i32
  }
  func.func @transform_3(%arg0: i32, %arg1: i32) -> (i32, i32) {
    %c0_i32 = arith.constant 0 : i32
    %c0_i32_0 = arith.constant 0 : i32
    %c0_i32_1 = arith.constant 0 : i32
    return %c0_i32, %c0_i32_0 : i32, i32
  }
  func.func @transform_4(%arg0: i32, %arg1: i32) -> (i32, i32) {
    %c0_i32 = arith.constant 0 : i32
    %c0_i32_0 = arith.constant 0 : i32
    return %arg1, %c0_i32 : i32, i32
  }
  func.func @transform_5(%arg0: i32, %arg1: i32) -> (i32, i32) {
    %c0_i32 = arith.constant 0 : i32
    %c0_i32_0 = arith.constant 0 : i32
    return %c0_i32, %arg1 : i32, i32
  }
  func.func @transform_6(%arg0: i32, %arg1: i32) -> (i32, i32) {
    %c0_i32 = arith.constant 0 : i32
    %c0_i32_0 = arith.constant 0 : i32
    %c0_i32_1 = arith.constant 0 : i32
    return %c0_i32, %c0_i32_0 : i32, i32
  }
  func.func @transform_7(%arg0: i32, %arg1: i32) -> (i32, i32, i32) {
    %c0_i32 = arith.constant 0 : i32
    %c0_i32_0 = arith.constant 0 : i32
    %c0_i32_1 = arith.constant 0 : i32
    return %arg0, %c0_i32, %c0_i32_0 : i32, i32, i32
  }
}

</mosaic_0001>

<llo_original>
// kernel: tpu_custom_call.1
$region0: #{tpu_custom_call.1}
  #allocation0 [shape = 'u32[]', space=smem, size = 0x4, offset = 0x4, fixed_abs, tag = 'smem constant byte address 0x4 - core index']
  #allocation1 [shape = 'u32[144,128]{1,0:T(1,128)}', space=vmem, size = 0x12000, scoped, tag = 'internal scratch']
  #allocation2 [shape = 'bf16[32,30]{1,0:T(16,128)(2,1)}', space=vmem, size = 0x2000, scoped, tag = 'scratch operand']
  #allocation3 [shape = 'f32[2,10,10]{2,1,0:T(8,128)}', space=vmem, size = 0x4000, scoped, tag = 'scratch operand']
  #allocation4 [shape = 'f32[2]{0:T(128)}', space=smem, size = 0x200, scoped, tag = 'scratch operand']
  %s0 = inlined_call_operand.vmem [shape: bf16[2,32,16], index: 0, kind: input, shape index: {}]
  %s1 = inlined_call_operand.vmem [shape: bf16[2,30,30], index: 1, kind: input, shape index: {}]
  %s2 = inlined_call_operand.vmem [shape: f32[2,2,10,10], index: 2, kind: input, shape index: {}]
  %s3 = inlined_call_operand.vmem [shape: bf16[16,30], index: 3, kind: input, shape index: {}]
  %s4 = inlined_call_operand.vmem [shape: bf16[30,16], index: 4, kind: input, shape index: {}]
  %s5 = inlined_call_operand.vmem [shape: f32[10,30], index: 5, kind: input, shape index: {}]
  %s6 = inlined_call_operand.vmem [shape: f32[30,10], index: 6, kind: input, shape index: {}]
  %s7 = inlined_call_operand.hbm [shape: f32[1,8,128], index: 7, kind: output, shape index: {}]
  %s8 = sld [smem:[#allocation0]]
  $region46: #{tpu_custom_call.1} parent=0
    _
  %s10 = ssub.s32 1, %s8
  %s11 = scalar_select 0, %s10, %s8
  $region1: #{tpu_custom_call.1} parent=0
    #allocation5 [shape = 'u8[4096]{0}', space=vmem, size = 0x1000, scoped, tag = 'output window, operand 0, single buffered']
    #allocation6 [shape = 's32[1]{0}', space=sflag, size = 0x4, scoped, tag = 'scoped memory for tpu_custom_call.1']
    %12 = vsyncpa [#allocation6], 0
    // Predicated region
    $region2: #{tpu_custom_call.1} parent=1 // pred_check
      _
    $region3: #{tpu_custom_call.1} parent=1 // pred_check_branch
      %14 = sbr.rel (0) target = $region5
    $region4: #{tpu_custom_call.1} parent=1 // pred_region
      _
    $region5: #{tpu_custom_call.1} parent=1 // pred_fallthru
      _
    // Predicated region
    $region6: #{tpu_custom_call.1} parent=1 // pred_check
      _
    $region7: #{tpu_custom_call.1} parent=1 // pred_check_branch
      %16 = sbr.rel (0) target = $region9
    $region8: #{tpu_custom_call.1} parent=1 // pred_region
      _
    $region9: #{tpu_custom_call.1} parent=1 // pred_fallthru
      _
    // Predicated region
    $region10: #{tpu_custom_call.1} parent=1 // pred_check
      _
    $region11: #{tpu_custom_call.1} parent=1 // pred_check_branch
      %18 = sbr.rel (0) target = $region13
    $region12: #{tpu_custom_call.1} parent=1 // pred_region
      _
    $region13: #{tpu_custom_call.1} parent=1 // pred_fallthru
      _
    // Predicated region
    $region14: #{tpu_custom_call.1} parent=1 // pred_check
      _
    $region15: #{tpu_custom_call.1} parent=1 // pred_check_branch
      %20 = sbr.rel (0) target = $region17
    $region16: #{tpu_custom_call.1} parent=1 // pred_region
      _
    $region17: #{tpu_custom_call.1} parent=1 // pred_fallthru
      _
    // Predicated region
    $region18: #{tpu_custom_call.1} parent=1 // pred_check
      _
    $region19: #{tpu_custom_call.1} parent=1 // pred_check_branch
      %22 = sbr.rel (0) target = $region21
    $region20: #{tpu_custom_call.1} parent=1 // pred_region
      _
    $region21: #{tpu_custom_call.1} parent=1 // pred_fallthru
      _
    // Predicated region
    $region22: #{tpu_custom_call.1} parent=1 // pred_check
      _
    $region23: #{tpu_custom_call.1} parent=1 // pred_check_branch
      %24 = sbr.rel (0) target = $region25
    $region24: #{tpu_custom_call.1} parent=1 // pred_region
      _
    $region25: #{tpu_custom_call.1} parent=1 // pred_fallthru
      _
    // Predicated region
    $region26: #{tpu_custom_call.1} parent=1 // pred_check
      _
    $region27: #{tpu_custom_call.1} parent=1 // pred_check_branch
      %26 = sbr.rel (0) target = $region29
    $region28: #{tpu_custom_call.1} parent=1 // pred_region
      _
    $region29: #{tpu_custom_call.1} parent=1 // pred_fallthru
      _
    %p28 = scmp.eq.s32.totalorder 0, 0
    // Predicated region
    $region30: #{tpu_custom_call.1} parent=1 // pred_check
      %p29 = pneg %p28
    $region31: #{tpu_custom_call.1} parent=1 // pred_check_branch
      %31 = sbr.rel (%p29) target = $region33
    $region32: #{tpu_custom_call.1} parent=1 // pred_region
      %s32 = scalar_lea.vmem %s0, 16
      %v33 = vld [vmem:[%s32] sm:$0xf]
      %v34 = vld [vmem:[%s32 + $0x4] sm:$0xf]
      %v35 = vld [vmem:[%s32 + $0x8] sm:$0xf]
      %v36 = vld [vmem:[%s32 + $0xc] sm:$0xf]
      %v37 = vld [vmem:[%s0] sm:$0xf]
      %v38 = vld [vmem:[%s0 + $0x4] sm:$0xf]
      %v39 = vld [vmem:[%s0 + $0x8] sm:$0xf]
      %v40 = vld [vmem:[%s0 + $0xc] sm:$0xf]
      %v41 = vsub.bf16 %v33, %v37
      %v42 = vsub.bf16 %v34, %v38
      %v43 = vsub.bf16 %v35, %v39
      %v44 = vsub.bf16 %v36, %v40
      %v45 = vld [vmem:[%s3] sm:$0xf]
      %v46 = vld [vmem:[%s3 + $0x4] sm:$0xf]
      %v51 = vunpack.c.l.b16 %v41
      %v52 = vunpack.c.l.b16 %v42
      %v53 = vunpack.c.l.b16 %v43
      %v54 = vunpack.c.l.b16 %v44
      %v55 = vpack.c.b16 %v52, %v51
      %v56 = vpack.c.b16 %v54, %v53
      %v59 = vunpack.c.l.b16 %v45
      %v60 = vunpack.c.l.b16 %v46
      %v61 = vpack.c.b16 %v60, %v59
      %vm63 = vcmask 130048
      %v65 = vsel %vm63, %v55, 0
      %v68 = vsel %vm63, %v56, 0
      %70 = vmatprep.subr.bf16.mxu0 0
      %71 = vmatpush1.bf16.msra.mxu0 %v61
      %72 = vmatprep.subr.bf16.mxu0 0
      %73 = vmatpush1.bf16.msra.mxu0 0
      %74 = vmatprep.subr.bf16.mxu0 0
      %75 = vmatpush1.bf16.msra.mxu0 0
      %76 = vmatprep.subr.bf16.mxu0 0
      %77 = vmatpush1.bf16.msra.mxu0 0
      %78 = vmatprep.subr.bf16.mxu0 0
      %79 = vmatpush1.bf16.msra.mxu0 0
      %80 = vmatprep.subr.bf16.mxu0 0
      %81 = vmatpush1.bf16.msra.mxu0 0
      %82 = vmatprep.subr.bf16.mxu0 0
      %83 = vmatpush1.bf16.msra.mxu0 0
      %84 = vmatprep.subr.bf16.mxu0 0
      %85 = vmatpush1.bf16.msra.mxu0 0
      %86 = vmatprep.subr.bf16.mxu0 0
      %87 = vmatpush1.bf16.msra.mxu0 0
      %88 = vmatprep.subr.bf16.mxu0 0
      %89 = vmatpush1.bf16.msra.mxu0 0
      %90 = vmatprep.subr.bf16.mxu0 0
      %91 = vmatpush1.bf16.msra.mxu0 0
      %92 = vmatprep.subr.bf16.mxu0 0
      %93 = vmatpush1.bf16.msra.mxu0 0
      %94 = vmatprep.subr.bf16.mxu0 0
      %95 = vmatpush1.bf16.msra.mxu0 0
      %96 = vmatprep.subr.bf16.mxu0 0
      %97 = vmatpush1.bf16.msra.mxu0 0
      %98 = vmatprep.subr.bf16.mxu0 0
      %99 = vmatpush1.bf16.msra.mxu0 0
      %100 = vmatprep.subr.bf16.mxu0 0
      %101 = vmatpush1.bf16.msra.mxu0 0
      %102 = vmatprep.mubr.bf16.mxu0 0
      %103 = vmatmul.mubr.bf16.gmra.mrb[0].mxu0 %v65
      %v104 = vpop.f32.mrb[0].mxu0
      %v105 = vadd.f32 0.0, %v104
      %v106 = vpop.f32.mrb[0].mxu0
      %v107 = vpop.f32.mrb[0].mxu0
      %v108 = vadd.f32 0.0, %v107
      %v109 = vpop.f32.mrb[0].mxu0
      %110 = vmatprep.mubr.bf16.mxu0 0
      %111 = vmatmul.mubr.bf16.gmra.mrb[0].mxu0 %v68
      %v112 = vpop.f32.mrb[0].mxu0
      %v113 = vadd.f32 0.0, %v112
      %v114 = vpop.f32.mrb[0].mxu0
      %v115 = vpop.f32.mrb[0].mxu0
      %v116 = vadd.f32 0.0, %v115
      %v117 = vpop.f32.mrb[0].mxu0
      %118 = vdwg.mxu0
      %v119 = vpack.c.bf16 %v108, %v105
      %v120 = vpack.c.bf16 %v116, %v113
      %vm121 = vcmask 244736
      %122 = vst.msk [vmem:[#allocation2] sm:$0xff] %vm121, %v119
      %123 = vst.msk [vmem:[#allocation2 + $0x8] sm:$0xff] %vm121, %v120
      %vm124 = vcmask 80896
      %125 = vst.msk [vmem:[#allocation3] sm:$0xff] %vm124, 0.0
      %vm126 = vcmask 74752
      %127 = vst.msk [vmem:[#allocation3 + $0x8] sm:$0x3] %vm126, 0.0
      %128 = vst.msk [vmem:[#allocation3 + $0x10] sm:$0xff] %vm124, 0.0
      %129 = vst.msk [vmem:[#allocation3 + $0x18] sm:$0x3] %vm126, 0.0
      %s130 = scalar_lea.smem [#allocation4], 0
      %131 = sst [smem:[%s130]] 0.0
      %s132 = scalar_lea.smem [#allocation4], 1
      %133 = sst [smem:[%s132]] 0.0
    $region33: #{tpu_custom_call.1} parent=1 // pred_fallthru
      _
    %v134 = vld [vmem:[%s4] sm:$0xf]
    %v135 = vld [vmem:[%s4 + $0x4] sm:$0xf]
    %v136 = vld [vmem:[%s4 + $0x8] sm:$0xf]
    %v137 = vld [vmem:[%s4 + $0xc] sm:$0x7]
    %v138 = vld [vmem:[%s5] sm:$0xff]
    %v139 = vld [vmem:[%s5 + $0x8] sm:$0x3]
    %v140 = vld [vmem:[%s6] sm:$0xff]
    %v141 = vld [vmem:[%s6 + $0x8] sm:$0xff]
    %v142 = vld [vmem:[%s6 + $0x10] sm:$0xff]
    %v143 = vld [vmem:[%s6 + $0x18] sm:$0x3f]
    %v144 = vld [vmem:[#allocation2] sm:$0xff]
    %v149 = vunpack.c.l.b16 %v134
    %v150 = vunpack.c.l.b16 %v135
    %v151 = vunpack.c.l.b16 %v136
    %v152 = vunpack.c.l.b16 %v137
    %v153 = vpack.c.b16 %v150, %v149
    %v154 = vpack.c.b16 %v152, %v151
    %vm155 = vcmask 130048
    %v157 = vsel %vm155, %v153, 0
    %v160 = vsel %vm155, %v154, 0
    %162 = vmatprep.subr.bf16.mxu0 0
    %163 = vmatpush1.bf16.msra.mxu0 %v144
    %164 = vmatprep.subr.bf16.mxu0 0
    %165 = vmatpush1.bf16.msra.mxu0 0
    %166 = vmatprep.subr.bf16.mxu0 0
    %167 = vmatpush1.bf16.msra.mxu0 0
    %168 = vmatprep.subr.bf16.mxu0 0
    %169 = vmatpush1.bf16.msra.mxu0 0
    %170 = vmatprep.subr.bf16.mxu0 0
    %171 = vmatpush1.bf16.msra.mxu0 0
    %172 = vmatprep.subr.bf16.mxu0 0
    %173 = vmatpush1.bf16.msra.mxu0 0
    %174 = vmatprep.subr.bf16.mxu0 0
    %175 = vmatpush1.bf16.msra.mxu0 0
    %176 = vmatprep.subr.bf16.mxu0 0
    %177 = vmatpush1.bf16.msra.mxu0 0
    %178 = vmatprep.subr.bf16.mxu0 0
    %179 = vmatpush1.bf16.msra.mxu0 0
    %180 = vmatprep.subr.bf16.mxu0 0
    %181 = vmatpush1.bf16.msra.mxu0 0
    %182 = vmatprep.subr.bf16.mxu0 0
    %183 = vmatpush1.bf16.msra.mxu0 0
    %184 = vmatprep.subr.bf16.mxu0 0
    %185 = vmatpush1.bf16.msra.mxu0 0
    %186 = vmatprep.subr.bf16.mxu0 0
    %187 = vmatpush1.bf16.msra.mxu0 0
    %188 = vmatprep.subr.bf16.mxu0 0
    %189 = vmatpush1.bf16.msra.mxu0 0
    %190 = vmatprep.subr.bf16.mxu0 0
    %191 = vmatpush1.bf16.msra.mxu0 0
    %192 = vmatprep.subr.bf16.mxu0 0
    %193 = vmatpush1.bf16.msra.mxu0 0
    %194 = vmatprep.mubr.bf16.mxu0 0
    %195 = vmatmul.mubr.bf16.gmra.mrb[0].mxu0 %v157
    %v196 = vpop.f32.mrb[0].mxu0
    %v197 = vadd.f32 0.0, %v196
    %v198 = vpop.f32.mrb[0].mxu0
    %v199 = vpop.f32.mrb[0].mxu0
    %v200 = vadd.f32 0.0, %v199
    %v201 = vpop.f32.mrb[0].mxu0
    %202 = vmatprep.mubr.bf16.mxu0 0
    %203 = vmatmul.mubr.bf16.gmra.mrb[0].mxu0 %v160
    %v204 = vpop.f32.mrb[0].mxu0
    %v205 = vadd.f32 0.0, %v204
    %v206 = vpop.f32.mrb[0].mxu0
    %v207 = vpop.f32.mrb[0].mxu0
    %v208 = vadd.f32 0.0, %v207
    %v209 = vpop.f32.mrb[0].mxu0
    %210 = vdwg.mxu0
    %v211 = vld [vmem:[%s1] sm:$0xf]
    %v212 = vld [vmem:[%s1 + $0x4] sm:$0xf]
    %v213 = vld [vmem:[%s1 + $0x8] sm:$0xf]
    %v214 = vld [vmem:[%s1 + $0xc] sm:$0x7]
    %v215 = vunpack.c.l.bf16 %v211
    %v216 = vunpack.c.l.bf16 %v212
    %v217 = vunpack.c.l.bf16 %v213
    %v218 = vunpack.c.l.bf16 %v214
    %v219 = vcvt.f32.s32.to.zero.pseudo %v215
    %v220 = vcvt.f32.s32.to.zero.pseudo %v216
    %v221 = vcvt.f32.s32.to.zero.pseudo %v217
    %v222 = vcvt.f32.s32.to.zero.pseudo %v218
    %vm223 = vcmp.eq.s32.totalorder %v219, 1
    %vm224 = vcmp.eq.s32.totalorder %v220, 1
    %vm225 = vcmp.eq.s32.totalorder %v221, 1
    %vm226 = vcmp.eq.s32.totalorder %v222, 1
    %v227 = vsub.f32 0.0, %v197
    %v228 = vsub.f32 0.0, %v200
    %v229 = vsub.f32 0.0, %v205
    %v230 = vsub.f32 0.0, %v208
    %v231 = vsel %vm223, %v227, %v197
    %v232 = vsel %vm224, %v228, %v200
    %v233 = vsel %vm225, %v229, %v205
    %v234 = vsel %vm226, %v230, %v208
    %v235 = vmax.f32 %v231, 0.0
    %v236 = vmax.f32 %v232, 0.0
    %v237 = vmax.f32 %v233, 0.0
    %v238 = vmax.f32 %v234, 0.0
    %v239 = vand.u32 2147483647, %v231
    %v240 = vand.u32 2147483647, %v232
    %v241 = vand.u32 2147483647, %v233
    %v242 = vand.u32 2147483647, %v234
    %v243 = vsub.f32 0.0, %v239
    %v244 = vsub.f32 0.0, %v240
    %v245 = vsub.f32 0.0, %v241
    %v246 = vsub.f32 0.0, %v242
    %v247 = vmul.f32 %v243, 1.442695
    %v248 = vpow.pop %v247
    %v249 = vmul.f32 %v244, 1.442695
    %v250 = vpow.pop %v249
    %v251 = vmul.f32 %v245, 1.442695
    %v252 = vpow.pop %v251
    %v253 = vmul.f32 %v246, 1.442695
    %v254 = vpow.pop %v253
    %v255 = vadd.f32 %v248, 1.0
    %v256 = vadd.f32 %v250, 1.0
    %v257 = vadd.f32 %v252, 1.0
    %v258 = vadd.f32 %v254, 1.0
    %v259 = vlog2.pop %v255
    %v260 = vmul.f32 %v259, 0.6931472
    %v261 = vlog2.pop %v256
    %v262 = vmul.f32 %v261, 0.6931472
    %v263 = vlog2.pop %v257
    %v264 = vmul.f32 %v263, 0.6931472
    %v265 = vlog2.pop %v258
    %v266 = vmul.f32 %v265, 0.6931472
    %v267 = vadd.f32 %v235, %v260
    %v268 = vadd.f32 %v236, %v262
    %v269 = vadd.f32 %v237, %v264
    %v270 = vadd.f32 %v238, %v266
    %vm271 = vcmask 244736
    %v272 = vsel %vm271, %v267, 0.0
    %v273 = vsel %vm271, %v268, 0.0
    %v274 = vadd.f32 %v272, %v273
    %v275 = vsel %vm271, %v269, 0.0
    %v276 = vadd.f32 %v274, %v275
    %vm277 = vcmask 242688
    %v278 = vsel %vm277, %v270, 0.0
    %v279 = vadd.f32 %v276, %v278
    %280 = vadd.xlane.f32.xlu0 %v279
    %v281 = vpop.xlane.xlu0 %280
    %v282 = vrot.slane %v281, 4
    %v283 = vadd.f32 %v281, %v282
    %v284 = vrot.slane %v283, 2
    %v285 = vadd.f32 %v283, %v284
    %v286 = vrot.slane %v285, 1
    %v287 = vadd.f32 %v285, %v286
    %s288 = vtos %v287
    %s289 = smul.f32 %s288, 0.9
    %v290 = vsel %vm223, %v267, 0.0
    %v291 = vsel %vm224, %v268, 0.0
    %v292 = vsel %vm225, %v269, 0.0
    %v293 = vsel %vm226, %v270, 0.0
    %v294 = vsel %vm271, %v290, 0.0
    %v295 = vsel %vm271, %v291, 0.0
    %v296 = vadd.f32 %v294, %v295
    %v297 = vsel %vm271, %v292, 0.0
    %v298 = vadd.f32 %v296, %v297
    %v299 = vsel %vm277, %v293, 0.0
    %v300 = vadd.f32 %v298, %v299
    %301 = vadd.xlane.f32.xlu0 %v300
    %v302 = vpop.xlane.xlu0 %301
    %v303 = vrot.slane %v302, 4
    %v304 = vadd.f32 %v302, %v303
    %v305 = vrot.slane %v304, 2
    %v306 = vadd.f32 %v304, %v305
    %v307 = vrot.slane %v306, 1
    %v308 = vadd.f32 %v306, %v307
    %s309 = vtos %v308
    %s310 = smul.f32 %s309, 0.2
    %s311 = sadd.f32 %s289, %s310
    %s312 = sadd.f32 %s311, 0.0
    %v313 = vsel %vm223, 1, 0
    %v314 = vsel %vm224, 1, 0
    %v315 = vsel %vm225, 1, 0
    %v316 = vsel %vm226, 1, 0
    %v317 = vcvt.s32.f32 %v313
    %v318 = vcvt.s32.f32 %v314
    %v319 = vcvt.s32.f32 %v315
    %v320 = vcvt.s32.f32 %v316
    %v321 = vsel %vm271, %v317, 0.0
    %v322 = vsel %vm271, %v318, 0.0
    %v323 = vadd.f32 %v321, %v322
    %v324 = vsel %vm271, %v319, 0.0
    %v325 = vadd.f32 %v323, %v324
    %v326 = vsel %vm277, %v320, 0.0
    %v327 = vadd.f32 %v325, %v326
    %328 = vadd.xlane.f32.xlu0 %v327
    %v329 = vpop.xlane.xlu0 %328
    %v330 = vrot.slane %v329, 4
    %v331 = vadd.f32 %v329, %v330
    %v332 = vrot.slane %v331, 2
    %v333 = vadd.f32 %v331, %v332
    %v334 = vrot.slane %v333, 1
    %v335 = vadd.f32 %v333, %v334
    %s336 = vtos %v335
    %s337 = sadd.f32 %s336, 0.0
    %v338 = vld [vmem:[#allocation3] sm:$0xff]
    %v339 = vld [vmem:[#allocation3 + $0x8] sm:$0x3]
    %v341 = vsel %vm271, %v138, 0
    %v344 = vsel %vm271, %v139, 0
    %vm346 = vcmask 1045504
    %v348 = vsel %vm346, %v218, 0
    %350 = vmatprep.subr.mxu0 0.0
    %351 = vmatpush1.msra.mxu0 %v215
    %352 = vmatprep.subr.mxu0 0.0
    %353 = vmatpush1.msra.mxu0 %v216
    %354 = vmatprep.subr.mxu0 0.0
    %355 = vmatpush1.msra.mxu0 %v217
    %356 = vmatprep.subr.mxu0 0.0
    %357 = vmatpush1.msra.mxu0 %v348
    %358 = vmatprep.subr.mxu0 0.0
    %359 = vmatpush1.msra.mxu0 0.0
    %360 = vmatprep.subr.mxu0 0.0
    %361 = vmatpush1.msra.mxu0 0.0
    %362 = vmatprep.subr.mxu0 0.0
    %363 = vmatpush1.msra.mxu0 0.0
    %364 = vmatprep.subr.mxu0 0.0
    %365 = vmatpush1.msra.mxu0 0.0
    %366 = vmatprep.subr.mxu0 0.0
    %367 = vmatpush1.msra.mxu0 0.0
    %368 = vmatprep.subr.mxu0 0.0
    %369 = vmatpush1.msra.mxu0 0.0
    %370 = vmatprep.subr.mxu0 0.0
    %371 = vmatpush1.msra.mxu0 0.0
    %372 = vmatprep.subr.mxu0 0.0
    %373 = vmatpush1.msra.mxu0 0.0
    %374 = vmatprep.subr.mxu0 0.0
    %375 = vmatpush1.msra.mxu0 0.0
    %376 = vmatprep.subr.mxu0 0.0
    %377 = vmatpush1.msra.mxu0 0.0
    %378 = vmatprep.subr.mxu0 0.0
    %379 = vmatpush1.msra.mxu0 0.0
    %380 = vmatprep.subr.mxu0 0.0
    %381 = vmatpush1.msra.mxu0 0.0
    %382 = vmatprep.subr.mxu0 0.0
    %383 = vmatpush1.msra.mxu0 0.0
    %384 = vmatprep.subr.mxu0 0.0
    %385 = vmatpush1.msra.mxu0 0.0
    %386 = vmatprep.subr.mxu0 0.0
    %387 = vmatpush1.msra.mxu0 0.0
    %388 = vmatprep.subr.mxu0 0.0
    %389 = vmatpush1.msra.mxu0 0.0
    %390 = vmatprep.subr.mxu0 0.0
    %391 = vmatpush1.msra.mxu0 0.0
    %392 = vmatprep.subr.mxu0 0.0
    %393 = vmatpush1.msra.mxu0 0.0
    %394 = vmatprep.subr.mxu0 0.0
    %395 = vmatpush1.msra.mxu0 0.0
    %396 = vmatprep.subr.mxu0 0.0
    %397 = vmatpush1.msra.mxu0 0.0
    %398 = vmatprep.subr.mxu0 0.0
    %399 = vmatpush1.msra.mxu0 0.0
    %400 = vmatprep.subr.mxu0 0.0
    %401 = vmatpush1.msra.mxu0 0.0
    %402 = vmatprep.subr.mxu0 0.0
    %403 = vmatpush1.msra.mxu0 0.0
    %404 = vmatprep.subr.mxu0 0.0
    %405 = vmatpush1.msra.mxu0 0.0
    %406 = vmatprep.subr.mxu0 0.0
    %407 = vmatpush1.msra.mxu0 0.0
    %408 = vmatprep.subr.mxu0 0.0
    %409 = vmatpush1.msra.mxu0 0.0
    %410 = vmatprep.subr.mxu0 0.0
    %411 = vmatpush1.msra.mxu0 0.0
    %412 = vmatprep.subr.mxu0 0.0
    %413 = vmatpush1.msra.mxu0 0.0
    %414 = vmatprep.mubr.f32.mxu0 0.0
    %415 = vmatmul.mubr.f32.gmra.mrb[0].mxu0 %v341
    %v416 = vpop.f32.mrb[0].mxu0
    %v417 = vadd.f32 0.0, %v416
    %v418 = vpop.f32.mrb[0].mxu0
    %419 = vmatprep.mubr.f32.mxu0 0.0
    %420 = vmatmul.mubr.f32.gmra.mrb[0].mxu0 %v344
    %v421 = vpop.f32.mrb[0].mxu0
    %v422 = vadd.f32 0.0, %v421
    %v423 = vpop.f32.mrb[0].mxu0
    %424 = vdwg.mxu0
    %v426 = vsel %vm271, %v417, 0
    %v429 = vsel %vm271, %v422, 0
    %v432 = vsel %vm346, %v143, 0
    %434 = vmatprep.subr.mxu0 0.0
    %435 = vmatpush1.msra.mxu0 %v140
    %436 = vmatprep.subr.mxu0 0.0
    %437 = vmatpush1.msra.mxu0 %v141
    %438 = vmatprep.subr.mxu0 0.0
    %439 = vmatpush1.msra.mxu0 %v142
    %440 = vmatprep.subr.mxu0 0.0
    %441 = vmatpush1.msra.mxu0 %v432
    %442 = vmatprep.subr.mxu0 0.0
    %443 = vmatpush1.msra.mxu0 0.0
    %444 = vmatprep.subr.mxu0 0.0
    %445 = vmatpush1.msra.mxu0 0.0
    %446 = vmatprep.subr.mxu0 0.0
    %447 = vmatpush1.msra.mxu0 0.0
    %448 = vmatprep.subr.mxu0 0.0
    %449 = vmatpush1.msra.mxu0 0.0
    %450 = vmatprep.subr.mxu0 0.0
    %451 = vmatpush1.msra.mxu0 0.0
    %452 = vmatprep.subr.mxu0 0.0
    %453 = vmatpush1.msra.mxu0 0.0
    %454 = vmatprep.subr.mxu0 0.0
    %455 = vmatpush1.msra.mxu0 0.0
    %456 = vmatprep.subr.mxu0 0.0
    %457 = vmatpush1.msra.mxu0 0.0
    %458 = vmatprep.subr.mxu0 0.0
    %459 = vmatpush1.msra.mxu0 0.0
    %460 = vmatprep.subr.mxu0 0.0
    %461 = vmatpush1.msra.mxu0 0.0
    %462 = vmatprep.subr.mxu0 0.0
    %463 = vmatpush1.msra.mxu0 0.0
    %464 = vmatprep.subr.mxu0 0.0
    %465 = vmatpush1.msra.mxu0 0.0
    %466 = vmatprep.subr.mxu0 0.0
    %467 = vmatpush1.msra.mxu0 0.0
    %468 = vmatprep.subr.mxu0 0.0
    %469 = vmatpush1.msra.mxu0 0.0
    %470 = vmatprep.subr.mxu0 0.0
    %471 = vmatpush1.msra.mxu0 0.0
    %472 = vmatprep.subr.mxu0 0.0
    %473 = vmatpush1.msra.mxu0 0.0
    %474 = vmatprep.subr.mxu0 0.0
    %475 = vmatpush1.msra.mxu0 0.0
    %476 = vmatprep.subr.mxu0 0.0
    %477 = vmatpush1.msra.mxu0 0.0
    %478 = vmatprep.subr.mxu0 0.0
    %479 = vmatpush1.msra.mxu0 0.0
    %480 = vmatprep.subr.mxu0 0.0
    %481 = vmatpush1.msra.mxu0 0.0
    %482 = vmatprep.subr.mxu0 0.0
    %483 = vmatpush1.msra.mxu0 0.0
    %484 = vmatprep.subr.mxu0 0.0
    %485 = vmatpush1.msra.mxu0 0.0
    %486 = vmatprep.subr.mxu0 0.0
    %487 = vmatpush1.msra.mxu0 0.0
    %488 = vmatprep.subr.mxu0 0.0
    %489 = vmatpush1.msra.mxu0 0.0
    %490 = vmatprep.subr.mxu0 0.0
    %491 = vmatpush1.msra.mxu0 0.0
    %492 = vmatprep.subr.mxu0 0.0
    %493 = vmatpush1.msra.mxu0 0.0
    %494 = vmatprep.subr.mxu0 0.0
    %495 = vmatpush1.msra.mxu0 0.0
    %496 = vmatprep.subr.mxu0 0.0
    %497 = vmatpush1.msra.mxu0 0.0
    %498 = vmatprep.mubr.f32.mxu0 0.0
    %499 = vmatmul.mubr.f32.gmra.mrb[0].mxu0 %v426
    %v500 = vpop.f32.mrb[0].mxu0
    %v501 = vadd.f32 0.0, %v500
    %v502 = vpop.f32.mrb[0].mxu0
    %503 = vmatprep.mubr.f32.mxu0 0.0
    %504 = vmatmul.mubr.f32.gmra.mrb[0].mxu0 %v429
    %v505 = vpop.f32.mrb[0].mxu0
    %v506 = vadd.f32 0.0, %v505
    %v507 = vpop.f32.mrb[0].mxu0
    %508 = vdwg.mxu0
    %v509 = vadd.f32 %v338, %v501
    %v510 = vadd.f32 %v339, %v506
    %vm511 = vcmask 80896
    %512 = vst.msk [vmem:[#allocation3] sm:$0xff] %vm511, %v509
    %vm513 = vcmask 74752
    %514 = vst.msk [vmem:[#allocation3 + $0x8] sm:$0x3] %vm513, %v510
    %v515 = vld [vmem:[#allocation2 + $0x8] sm:$0xff]
    %516 = vmatprep.subr.bf16.mxu0 0
    %517 = vmatpush1.bf16.msra.mxu0 %v515
    %518 = vmatprep.subr.bf16.mxu0 0
    %519 = vmatpush1.bf16.msra.mxu0 0
    %520 = vmatprep.subr.bf16.mxu0 0
    %521 = vmatpush1.bf16.msra.mxu0 0
    %522 = vmatprep.subr.bf16.mxu0 0
    %523 = vmatpush1.bf16.msra.mxu0 0
    %524 = vmatprep.subr.bf16.mxu0 0
    %525 = vmatpush1.bf16.msra.mxu0 0
    %526 = vmatprep.subr.bf16.mxu0 0
    %527 = vmatpush1.bf16.msra.mxu0 0
    %528 = vmatprep.subr.bf16.mxu0 0
    %529 = vmatpush1.bf16.msra.mxu0 0
    %530 = vmatprep.subr.bf16.mxu0 0
    %531 = vmatpush1.bf16.msra.mxu0 0
    %532 = vmatprep.subr.bf16.mxu0 0
    %533 = vmatpush1.bf16.msra.mxu0 0
    %534 = vmatprep.subr.bf16.mxu0 0
    %535 = vmatpush1.bf16.msra.mxu0 0
    %536 = vmatprep.subr.bf16.mxu0 0
    %537 = vmatpush1.bf16.msra.mxu0 0
    %538 = vmatprep.subr.bf16.mxu0 0
    %539 = vmatpush1.bf16.msra.mxu0 0
    %540 = vmatprep.subr.bf16.mxu0 0
    %541 = vmatpush1.bf16.msra.mxu0 0
    %542 = vmatprep.subr.bf16.mxu0 0
    %543 = vmatpush1.bf16.msra.mxu0 0
    %544 = vmatprep.subr.bf16.mxu0 0
    %545 = vmatpush1.bf16.msra.mxu0 0
    %546 = vmatprep.subr.bf16.mxu0 0
    %547 = vmatpush1.bf16.msra.mxu0 0
    %548 = vmatprep.mubr.bf16.mxu0 0
    %549 = vmatmul.mubr.bf16.gmra.mrb[0].mxu0 %v157
    %v550 = vpop.f32.mrb[0].mxu0
    %v551 = vadd.f32 0.0, %v550
    %v552 = vpop.f32.mrb[0].mxu0
    %v553 = vpop.f32.mrb[0].mxu0
    %v554 = vadd.f32 0.0, %v553
    %v555 = vpop.f32.mrb[0].mxu0
    %556 = vmatprep.mubr.bf16.mxu0 0
    %557 = vmatmul.mubr.bf16.gmra.mrb[0].mxu0 %v160
    %v558 = vpop.f32.mrb[0].mxu0
    %v559 = vadd.f32 0.0, %v558
    %v560 = vpop.f32.mrb[0].mxu0
    %v561 = vpop.f32.mrb[0].mxu0
    %v562 = vadd.f32 0.0, %v561
    %v563 = vpop.f32.mrb[0].mxu0
    %564 = vdwg.mxu0
    %s565 = scalar_lea.vmem %s1, 16
    %v566 = vld [vmem:[%s565] sm:$0xf]
    %v567 = vld [vmem:[%s565 + $0x4] sm:$0xf]
    %v568 = vld [vmem:[%s565 + $0x8] sm:$0xf]
    %v569 = vld [vmem:[%s565 + $0xc] sm:$0x7]
    %v570 = vunpack.c.l.bf16 %v566
    %v571 = vunpack.c.l.bf16 %v567
    %v572 = vunpack.c.l.bf16 %v568
    %v573 = vunpack.c.l.bf16 %v569
    %v574 = vcvt.f32.s32.to.zero.pseudo %v570
    %v575 = vcvt.f32.s32.to.zero.pseudo %v571
    %v576 = vcvt.f32.s32.to.zero.pseudo %v572
    %v577 = vcvt.f32.s32.to.zero.pseudo %v573
    %vm578 = vcmp.eq.s32.totalorder %v574, 1
    %vm579 = vcmp.eq.s32.totalorder %v575, 1
    %vm580 = vcmp.eq.s32.totalorder %v576, 1
    %vm581 = vcmp.eq.s32.totalorder %v577, 1
    %v582 = vsub.f32 0.0, %v551
    %v583 = vsub.f32 0.0, %v554
    %v584 = vsub.f32 0.0, %v559
    %v585 = vsub.f32 0.0, %v562
    %v586 = vsel %vm578, %v582, %v551
    %v587 = vsel %vm579, %v583, %v554
    %v588 = vsel %vm580, %v584, %v559
    %v589 = vsel %vm581, %v585, %v562
    %v590 = vmax.f32 %v586, 0.0
    %v591 = vmax.f32 %v587, 0.0
    %v592 = vmax.f32 %v588, 0.0
    %v593 = vmax.f32 %v589, 0.0
    %v594 = vand.u32 2147483647, %v586
    %v595 = vand.u32 2147483647, %v587
    %v596 = vand.u32 2147483647, %v588
    %v597 = vand.u32 2147483647, %v589
    %v598 = vsub.f32 0.0, %v594
    %v599 = vsub.f32 0.0, %v595
    %v600 = vsub.f32 0.0, %v596
    %v601 = vsub.f32 0.0, %v597
    %v602 = vmul.f32 %v598, 1.442695
    %v603 = vpow.pop %v602
    %v604 = vmul.f32 %v599, 1.442695
    %v605 = vpow.pop %v604
    %v606 = vmul.f32 %v600, 1.442695
    %v607 = vpow.pop %v606
    %v608 = vmul.f32 %v601, 1.442695
    %v609 = vpow.pop %v608
    %v610 = vadd.f32 %v603, 1.0
    %v611 = vadd.f32 %v605, 1.0
    %v612 = vadd.f32 %v607, 1.0
    %v613 = vadd.f32 %v609, 1.0
    %v614 = vlog2.pop %v610
    %v615 = vmul.f32 %v614, 0.6931472
    %v616 = vlog2.pop %v611
    %v617 = vmul.f32 %v616, 0.6931472
    %v618 = vlog2.pop %v612
    %v619 = vmul.f32 %v618, 0.6931472
    %v620 = vlog2.pop %v613
    %v621 = vmul.f32 %v620, 0.6931472
    %v622 = vadd.f32 %v590, %v615
    %v623 = vadd.f32 %v591, %v617
    %v624 = vadd.f32 %v592, %v619
    %v625 = vadd.f32 %v593, %v621
    %v626 = vsel %vm271, %v622, 0.0
    %v627 = vsel %vm271, %v623, 0.0
    %v628 = vadd.f32 %v626, %v627
    %v629 = vsel %vm271, %v624, 0.0
    %v630 = vadd.f32 %v628, %v629
    %v631 = vsel %vm277, %v625, 0.0
    %v632 = vadd.f32 %v630, %v631
    %633 = vadd.xlane.f32.xlu0 %v632
    %v634 = vpop.xlane.xlu0 %633
    %v635 = vrot.slane %v634, 4
    %v636 = vadd.f32 %v634, %v635
    %v637 = vrot.slane %v636, 2
    %v638 = vadd.f32 %v636, %v637
    %v639 = vrot.slane %v638, 1
    %v640 = vadd.f32 %v638, %v639
    %s641 = vtos %v640
    %s642 = smul.f32 %s641, 0.9
    %v643 = vsel %vm578, %v622, 0.0
    %v644 = vsel %vm579, %v623, 0.0
    %v645 = vsel %vm580, %v624, 0.0
    %v646 = vsel %vm581, %v625, 0.0
    %v647 = vsel %vm271, %v643, 0.0
    %v648 = vsel %vm271, %v644, 0.0
    %v649 = vadd.f32 %v647, %v648
    %v650 = vsel %vm271, %v645, 0.0
    %v651 = vadd.f32 %v649, %v650
    %v652 = vsel %vm277, %v646, 0.0
    %v653 = vadd.f32 %v651, %v652
    %654 = vadd.xlane.f32.xlu0 %v653
    %v655 = vpop.xlane.xlu0 %654
    %v656 = vrot.slane %v655, 4
    %v657 = vadd.f32 %v655, %v656
    %v658 = vrot.slane %v657, 2
    %v659 = vadd.f32 %v657, %v658
    %v660 = vrot.slane %v659, 1
    %v661 = vadd.f32 %v659, %v660
    %s662 = vtos %v661
    %s663 = smul.f32 %s662, 0.2
    %s664 = sadd.f32 %s642, %s663
    %s665 = sadd.f32 %s312, %s664
    %v666 = vsel %vm578, 1, 0
    %v667 = vsel %vm579, 1, 0
    %v668 = vsel %vm580, 1, 0
    %v669 = vsel %vm581, 1, 0
    %v670 = vcvt.s32.f32 %v666
    %v671 = vcvt.s32.f32 %v667
    %v672 = vcvt.s32.f32 %v668
    %v673 = vcvt.s32.f32 %v669
    %v674 = vsel %vm271, %v670, 0.0
    %v675 = vsel %vm271, %v671, 0.0
    %v676 = vadd.f32 %v674, %v675
    %v677 = vsel %vm271, %v672, 0.0
    %v678 = vadd.f32 %v676, %v677
    %v679 = vsel %vm277, %v673, 0.0
    %v680 = vadd.f32 %v678, %v679
    %681 = vadd.xlane.f32.xlu0 %v680
    %v682 = vpop.xlane.xlu0 %681
    %v683 = vrot.slane %v682, 4
    %v684 = vadd.f32 %v682, %v683
    %v685 = vrot.slane %v684, 2
    %v686 = vadd.f32 %v684, %v685
    %v687 = vrot.slane %v686, 1
    %v688 = vadd.f32 %v686, %v687
    %s689 = vtos %v688
    %s690 = sadd.f32 %s337, %s689
    %s691 = scalar_lea.vmem [#allocation3], 16
    %v692 = vld [vmem:[%s691] sm:$0xff]
    %v693 = vld [vmem:[%s691 + $0x8] sm:$0x3]
    %v695 = vsel %vm346, %v573, 0
    %697 = vmatprep.subr.mxu0 0.0
    %698 = vmatpush1.msra.mxu0 %v570
    %699 = vmatprep.subr.mxu0 0.0
    %700 = vmatpush1.msra.mxu0 %v571
    %701 = vmatprep.subr.mxu0 0.0
    %702 = vmatpush1.msra.mxu0 %v572
    %703 = vmatprep.subr.mxu0 0.0
    %704 = vmatpush1.msra.mxu0 %v695
    %705 = vmatprep.subr.mxu0 0.0
    %706 = vmatpush1.msra.mxu0 0.0
    %707 = vmatprep.subr.mxu0 0.0
    %708 = vmatpush1.msra.mxu0 0.0
    %709 = vmatprep.subr.mxu0 0.0
    %710 = vmatpush1.msra.mxu0 0.0
    %711 = vmatprep.subr.mxu0 0.0
    %712 = vmatpush1.msra.mxu0 0.0
    %713 = vmatprep.subr.mxu0 0.0
    %714 = vmatpush1.msra.mxu0 0.0
    %715 = vmatprep.subr.mxu0 0.0
    %716 = vmatpush1.msra.mxu0 0.0
    %717 = vmatprep.subr.mxu0 0.0
    %718 = vmatpush1.msra.mxu0 0.0
    %719 = vmatprep.subr.mxu0 0.0
    %720 = vmatpush1.msra.mxu0 0.0
    %721 = vmatprep.subr.mxu0 0.0
    %722 = vmatpush1.msra.mxu0 0.0
    %723 = vmatprep.subr.mxu0 0.0
    %724 = vmatpush1.msra.mxu0 0.0
    %725 = vmatprep.subr.mxu0 0.0
    %726 = vmatpush1.msra.mxu0 0.0
    %727 = vmatprep.subr.mxu0 0.0
    %728 = vmatpush1.msra.mxu0 0.0
    %729 = vmatprep.subr.mxu0 0.0
    %730 = vmatpush1.msra.mxu0 0.0
    %731 = vmatprep.subr.mxu0 0.0
    %732 = vmatpush1.msra.mxu0 0.0
    %733 = vmatprep.subr.mxu0 0.0
    %734 = vmatpush1.msra.mxu0 0.0
    %735 = vmatprep.subr.mxu0 0.0
    %736 = vmatpush1.msra.mxu0 0.0
    %737 = vmatprep.subr.mxu0 0.0
    %738 = vmatpush1.msra.mxu0 0.0
    %739 = vmatprep.subr.mxu0 0.0
    %740 = vmatpush1.msra.mxu0 0.0
    %741 = vmatprep.subr.mxu0 0.0
    %742 = vmatpush1.msra.mxu0 0.0
    %743 = vmatprep.subr.mxu0 0.0
    %744 = vmatpush1.msra.mxu0 0.0
    %745 = vmatprep.subr.mxu0 0.0
    %746 = vmatpush1.msra.mxu0 0.0
    %747 = vmatprep.subr.mxu0 0.0
    %748 = vmatpush1.msra.mxu0 0.0
    %749 = vmatprep.subr.mxu0 0.0
    %750 = vmatpush1.msra.mxu0 0.0
    %751 = vmatprep.subr.mxu0 0.0
    %752 = vmatpush1.msra.mxu0 0.0
    %753 = vmatprep.subr.mxu0 0.0
    %754 = vmatpush1.msra.mxu0 0.0
    %755 = vmatprep.subr.mxu0 0.0
    %756 = vmatpush1.msra.mxu0 0.0
    %757 = vmatprep.subr.mxu0 0.0
    %758 = vmatpush1.msra.mxu0 0.0
    %759 = vmatprep.subr.mxu0 0.0
    %760 = vmatpush1.msra.mxu0 0.0
    %761 = vmatprep.mubr.f32.mxu0 0.0
    %762 = vmatmul.mubr.f32.gmra.mrb[0].mxu0 %v341
    %v763 = vpop.f32.mrb[0].mxu0
    %v764 = vadd.f32 0.0, %v763
    %v765 = vpop.f32.mrb[0].mxu0
    %766 = vmatprep.mubr.f32.mxu0 0.0
    %767 = vmatmul.mubr.f32.gmra.mrb[0].mxu0 %v344
    %v768 = vpop.f32.mrb[0].mxu0
    %v769 = vadd.f32 0.0, %v768
    %v770 = vpop.f32.mrb[0].mxu0
    %771 = vdwg.mxu0
    %v773 = vsel %vm271, %v764, 0
    %v776 = vsel %vm271, %v769, 0
    %778 = vmatprep.subr.mxu0 0.0
    %779 = vmatpush1.msra.mxu0 %v140
    %780 = vmatprep.subr.mxu0 0.0
    %781 = vmatpush1.msra.mxu0 %v141
    %782 = vmatprep.subr.mxu0 0.0
    %783 = vmatpush1.msra.mxu0 %v142
    %784 = vmatprep.subr.mxu0 0.0
    %785 = vmatpush1.msra.mxu0 %v432
    %786 = vmatprep.subr.mxu0 0.0
    %787 = vmatpush1.msra.mxu0 0.0
    %788 = vmatprep.subr.mxu0 0.0
    %789 = vmatpush1.msra.mxu0 0.0
    %790 = vmatprep.subr.mxu0 0.0
    %791 = vmatpush1.msra.mxu0 0.0
    %792 = vmatprep.subr.mxu0 0.0
    %793 = vmatpush1.msra.mxu0 0.0
    %794 = vmatprep.subr.mxu0 0.0
    %795 = vmatpush1.msra.mxu0 0.0
    %796 = vmatprep.subr.mxu0 0.0
    %797 = vmatpush1.msra.mxu0 0.0
    %798 = vmatprep.subr.mxu0 0.0
    %799 = vmatpush1.msra.mxu0 0.0
    %800 = vmatprep.subr.mxu0 0.0
    %801 = vmatpush1.msra.mxu0 0.0
    %802 = vmatprep.subr.mxu0 0.0
    %803 = vmatpush1.msra.mxu0 0.0
    %804 = vmatprep.subr.mxu0 0.0
    %805 = vmatpush1.msra.mxu0 0.0
    %806 = vmatprep.subr.mxu0 0.0
    %807 = vmatpush1.msra.mxu0 0.0
    %808 = vmatprep.subr.mxu0 0.0
    %809 = vmatpush1.msra.mxu0 0.0
    %810 = vmatprep.subr.mxu0 0.0
    %811 = vmatpush1.msra.mxu0 0.0
    %812 = vmatprep.subr.mxu0 0.0
    %813 = vmatpush1.msra.mxu0 0.0
    %814 = vmatprep.subr.mxu0 0.0
    %815 = vmatpush1.msra.mxu0 0.0
    %816 = vmatprep.subr.mxu0 0.0
    %817 = vmatpush1.msra.mxu0 0.0
    %818 = vmatprep.subr.mxu0 0.0
    %819 = vmatpush1.msra.mxu0 0.0
    %820 = vmatprep.subr.mxu0 0.0
    %821 = vmatpush1.msra.mxu0 0.0
    %822 = vmatprep.subr.mxu0 0.0
    %823 = vmatpush1.msra.mxu0 0.0
    %824 = vmatprep.subr.mxu0 0.0
    %825 = vmatpush1.msra.mxu0 0.0
    %826 = vmatprep.subr.mxu0 0.0
    %827 = vmatpush1.msra.mxu0 0.0
    %828 = vmatprep.subr.mxu0 0.0
    %829 = vmatpush1.msra.mxu0 0.0
    %830 = vmatprep.subr.mxu0 0.0
    %831 = vmatpush1.msra.mxu0 0.0
    %832 = vmatprep.subr.mxu0 0.0
    %833 = vmatpush1.msra.mxu0 0.0
    %834 = vmatprep.subr.mxu0 0.0
    %835 = vmatpush1.msra.mxu0 0.0
    %836 = vmatprep.subr.mxu0 0.0
    %837 = vmatpush1.msra.mxu0 0.0
    %838 = vmatprep.subr.mxu0 0.0
    %839 = vmatpush1.msra.mxu0 0.0
    %840 = vmatprep.subr.mxu0 0.0
    %841 = vmatpush1.msra.mxu0 0.0
    %842 = vmatprep.mubr.f32.mxu0 0.0
    %843 = vmatmul.mubr.f32.gmra.mrb[0].mxu0 %v773
    %v844 = vpop.f32.mrb[0].mxu0
    %v845 = vadd.f32 0.0, %v844
    %v846 = vpop.f32.mrb[0].mxu0
    %847 = vmatprep.mubr.f32.mxu0 0.0
    %848 = vmatmul.mubr.f32.gmra.mrb[0].mxu0 %v776
    %v849 = vpop.f32.mrb[0].mxu0
    %v850 = vadd.f32 0.0, %v849
    %v851 = vpop.f32.mrb[0].mxu0
    %852 = vdwg.mxu0
    %v853 = vadd.f32 %v692, %v845
    %v854 = vadd.f32 %v693, %v850
    %855 = vst.msk [vmem:[%s691] sm:$0xff] %vm511, %v853
    %856 = vst.msk [vmem:[%s691 + $0x8] sm:$0x3] %vm513, %v854
    %s857 = sld [smem:[#allocation4]]
    %s858 = sadd.f32 %s857, %s665
    %s859 = scalar_lea.smem [#allocation4], 0
    %860 = sst [smem:[%s859]] %s858
    %s861 = sld [smem:[#allocation4 + $0x1]]
    %s862 = sadd.f32 %s861, %s690
    %s863 = scalar_lea.smem [#allocation4], 1
    %864 = sst [smem:[%s863]] %s862
    // Predicated region
    $region34: #{tpu_custom_call.1} parent=1 // pred_check
      %p865 = pneg %p28
    $region35: #{tpu_custom_call.1} parent=1 // pred_check_branch
      %867 = sbr.rel (%p865) target = $region37
    $region36: #{tpu_custom_call.1} parent=1 // pred_region
      %v868 = vld [vmem:[#allocation3] sm:$0xff]
      %v869 = vld [vmem:[#allocation3 + $0x8] sm:$0x3]
      %v870 = vcvt.f32.s32.to.zero.pseudo %v868
      %v871 = vcvt.f32.s32.to.zero.pseudo %v869
      %vm872 = vcmp.eq.s32.totalorder %v870, 1
      %vm873 = vcmp.eq.s32.totalorder %v871, 1
      %s874 = scalar_lea.vmem %s2, 16
      %v875 = vld [vmem:[%s874] sm:$0xff]
      %v876 = vld [vmem:[%s874 + $0x8] sm:$0x3]
      %v877 = vld [vmem:[%s2] sm:$0xff]
      %v878 = vld [vmem:[%s2 + $0x8] sm:$0x3]
      %v879 = vsub.f32 %v875, %v877
      %v880 = vsub.f32 %v876, %v878
      %v881 = vsub.f32 0.0, %v879
      %v882 = vsub.f32 0.0, %v880
      %v883 = vsel %vm872, %v881, %v879
      %v884 = vsel %vm873, %v882, %v880
      %v885 = vmax.f32 %v883, 0.0
      %v886 = vmax.f32 %v884, 0.0
      %v887 = vand.u32 2147483647, %v883
      %v888 = vand.u32 2147483647, %v884
      %v889 = vsub.f32 0.0, %v887
      %v890 = vsub.f32 0.0, %v888
      %v891 = vmul.f32 %v889, 1.442695
      %v892 = vpow.pop %v891
      %v893 = vmul.f32 %v890, 1.442695
      %v894 = vpow.pop %v893
      %v895 = vadd.f32 %v892, 1.0
      %v896 = vadd.f32 %v894, 1.0
      %v897 = vlog2.pop %v895
      %v898 = vmul.f32 %v897, 0.6931472
      %v899 = vlog2.pop %v896
      %v900 = vmul.f32 %v899, 0.6931472
      %v901 = vadd.f32 %v885, %v898
      %v902 = vadd.f32 %v886, %v900
      %v903 = vsel %vm511, %v901, 0.0
      %v904 = vsel %vm513, %v902, 0.0
      %v905 = vadd.f32 %v903, %v904
      %906 = vadd.xlane.f32.xlu0 %v905
      %v907 = vpop.xlane.xlu0 %906
      %v908 = vrot.slane %v907, 4
      %v909 = vadd.f32 %v907, %v908
      %v910 = vrot.slane %v909, 2
      %v911 = vadd.f32 %v909, %v910
      %v912 = vrot.slane %v911, 1
      %v913 = vadd.f32 %v911, %v912
      %s914 = vtos %v913
      %s915 = smul.f32 %s914, 0.9
      %v916 = vsel %vm872, %v901, 0.0
      %v917 = vsel %vm873, %v902, 0.0
      %v918 = vsel %vm511, %v916, 0.0
      %v919 = vsel %vm513, %v917, 0.0
      %v920 = vadd.f32 %v918, %v919
      %921 = vadd.xlane.f32.xlu0 %v920
      %v922 = vpop.xlane.xlu0 %921
      %v923 = vrot.slane %v922, 4
      %v924 = vadd.f32 %v922, %v923
      %v925 = vrot.slane %v924, 2
      %v926 = vadd.f32 %v924, %v925
      %v927 = vrot.slane %v926, 1
      %v928 = vadd.f32 %v926, %v927
      %s929 = vtos %v928
      %s930 = smul.f32 %s929, 0.2
      %s931 = sadd.f32 %s915, %s930
      %s932 = sadd.f32 %s931, 0.0
      %v933 = vsel %vm872, 1, 0
      %v934 = vsel %vm873, 1, 0
      %v935 = vcvt.s32.f32 %v933
      %v936 = vcvt.s32.f32 %v934
      %v937 = vsel %vm511, %v935, 0.0
      %v938 = vsel %vm513, %v936, 0.0
      %v939 = vadd.f32 %v937, %v938
      %940 = vadd.xlane.f32.xlu0 %v939
      %v941 = vpop.xlane.xlu0 %940
      %v942 = vrot.slane %v941, 4
      %v943 = vadd.f32 %v941, %v942
      %v944 = vrot.slane %v943, 2
      %v945 = vadd.f32 %v943, %v944
      %v946 = vrot.slane %v945, 1
      %v947 = vadd.f32 %v945, %v946
      %s948 = vtos %v947
      %s949 = sadd.f32 %s948, 0.0
      %v950 = vld [vmem:[%s691] sm:$0xff]
      %v951 = vld [vmem:[%s691 + $0x8] sm:$0x3]
      %v952 = vcvt.f32.s32.to.zero.pseudo %v950
      %v953 = vcvt.f32.s32.to.zero.pseudo %v951
      %vm954 = vcmp.eq.s32.totalorder %v952, 1
      %vm955 = vcmp.eq.s32.totalorder %v953, 1
      %s956 = scalar_lea.vmem %s2, 48
      %v957 = vld [vmem:[%s956] sm:$0xff]
      %v958 = vld [vmem:[%s956 + $0x8] sm:$0x3]
      %s959 = scalar_lea.vmem %s2, 32
      %v960 = vld [vmem:[%s959] sm:$0xff]
      %v961 = vld [vmem:[%s959 + $0x8] sm:$0x3]
      %v962 = vsub.f32 %v957, %v960
      %v963 = vsub.f32 %v958, %v961
      %v964 = vsub.f32 0.0, %v962
      %v965 = vsub.f32 0.0, %v963
      %v966 = vsel %vm954, %v964, %v962
      %v967 = vsel %vm955, %v965, %v963
      %v968 = vmax.f32 %v966, 0.0
      %v969 = vmax.f32 %v967, 0.0
      %v970 = vand.u32 2147483647, %v966
      %v971 = vand.u32 2147483647, %v967
      %v972 = vsub.f32 0.0, %v970
      %v973 = vsub.f32 0.0, %v971
      %v974 = vmul.f32 %v972, 1.442695
      %v975 = vpow.pop %v974
      %v976 = vmul.f32 %v973, 1.442695
      %v977 = vpow.pop %v976
      %v978 = vadd.f32 %v975, 1.0
      %v979 = vadd.f32 %v977, 1.0
      %v980 = vlog2.pop %v978
      %v981 = vmul.f32 %v980, 0.6931472
      %v982 = vlog2.pop %v979
      %v983 = vmul.f32 %v982, 0.6931472
      %v984 = vadd.f32 %v968, %v981
      %v985 = vadd.f32 %v969, %v983
      %v986 = vsel %vm511, %v984, 0.0
      %v987 = vsel %vm513, %v985, 0.0
      %v988 = vadd.f32 %v986, %v987
      %989 = vadd.xlane.f32.xlu0 %v988
      %v990 = vpop.xlane.xlu0 %989
      %v991 = vrot.slane %v990, 4
      %v992 = vadd.f32 %v990, %v991
      %v993 = vrot.slane %v992, 2
      %v994 = vadd.f32 %v992, %v993
      %v995 = vrot.slane %v994, 1
      %v996 = vadd.f32 %v994, %v995
      %s997 = vtos %v996
      %s998 = smul.f32 %s997, 0.9
      %v999 = vsel %vm954, %v984, 0.0
      %v1000 = vsel %vm955, %v985, 0.0
      %v1001 = vsel %vm511, %v999, 0.0
      %v1002 = vsel %vm513, %v1000, 0.0
      %v1003 = vadd.f32 %v1001, %v1002
      %1004 = vadd.xlane.f32.xlu0 %v1003
      %v1005 = vpop.xlane.xlu0 %1004
      %v1006 = vrot.slane %v1005, 4
      %v1007 = vadd.f32 %v1005, %v1006
      %v1008 = vrot.slane %v1007, 2
      %v1009 = vadd.f32 %v1007, %v1008
      %v1010 = vrot.slane %v1009, 1
      %v1011 = vadd.f32 %v1009, %v1010
      %s1012 = vtos %v1011
      %s1013 = smul.f32 %s1012, 0.2
      %s1014 = sadd.f32 %s998, %s1013
      %s1015 = sadd.f32 %s932, %s1014
      %v1016 = vsel %vm954, 1, 0
      %v1017 = vsel %vm955, 1, 0
      %v1018 = vcvt.s32.f32 %v1016
      %v1019 = vcvt.s32.f32 %v1017
      %v1020 = vsel %vm511, %v1018, 0.0
      %v1021 = vsel %vm513, %v1019, 0.0
      %v1022 = vadd.f32 %v1020, %v1021
      %1023 = vadd.xlane.f32.xlu0 %v1022
      %v1024 = vpop.xlane.xlu0 %1023
      %v1025 = vrot.slane %v1024, 4
      %v1026 = vadd.f32 %v1024, %v1025
      %v1027 = vrot.slane %v1026, 2
      %v1028 = vadd.f32 %v1026, %v1027
      %v1029 = vrot.slane %v1028, 1
      %v1030 = vadd.f32 %v1028, %v1029
      %s1031 = vtos %v1030
      %s1032 = sadd.f32 %s949, %s1031
      %v1033 = vlaneseq
      %v1034 = vshrl.u32 %v1033, 7
      %vm1035 = vcmp.eq.s32.totalorder %v1034, 0
      %s1036 = sld [smem:[#allocation4]]
      %v1037 = vstv %s1036
      %v1038 = vsel %vm1035, %v1037, 0.0
      %vm1039 = vcmp.eq.s32.totalorder %v1034, 1
      %s1040 = sld [smem:[#allocation4 + $0x1]]
      %v1041 = vstv %s1040
      %v1042 = vsel %vm1039, %v1041, 0.0
      %v1043 = vadd.f32 %v1038, %v1042
      %vm1044 = vcmp.eq.s32.totalorder %v1034, 2
      %v1045 = vstv %s1015
      %v1046 = vsel %vm1044, %v1045, 0.0
      %v1047 = vadd.f32 %v1043, %v1046
      %vm1048 = vcmp.eq.s32.totalorder %v1034, 3
      %v1049 = vstv %s1032
      %v1050 = vsel %vm1048, %v1049, 0.0
      %v1051 = vadd.f32 %v1047, %v1050
      %1052 = vst [vmem:[#allocation5] sm:$0xff] %v1051
    $region37: #{tpu_custom_call.1} parent=1 // pred_fallthru
      _
    // Predicated region
    $region38: #{tpu_custom_call.1} parent=1 // pred_check
      _
    $region39: #{tpu_custom_call.1} parent=1 // pred_check_branch
      %1054 = sbr.rel (0) target = $region41
    $region40: #{tpu_custom_call.1} parent=1 // pred_region
      %s1056 = ssub.s32 128, 128
      %1057 = vsyncadd [#allocation6], %s1056
      %s1059 = sshll.u32 [#allocation5], 4
      %s1060 = int_to_ptr.vmem [resolvable:$true] %s1059
      %1062 = dma.vmem_to_hbm [thread:$0]  %s1060, 128, %s7, [#allocation6]
    $region41: #{tpu_custom_call.1} parent=1 // pred_fallthru
      _
    // Predicated region
    $region42: #{tpu_custom_call.1} parent=1 // pred_check
      _
    $region43: #{tpu_custom_call.1} parent=1 // pred_check_branch
      %1064 = sbr.rel (0) target = $region45
    $region44: #{tpu_custom_call.1} parent=1 // pred_region
      %1065 = dma.done [#allocation6], 128
    $region45: #{tpu_custom_call.1} parent=1 // pred_fallthru
      _
    %1066 = vsyncpa [#allocation6], 1

</llo_original>
